<compile_context>
chip_gen: v6e
topology: v6e:2x2x1
jax: 0.10.0
libtpu: 0.0.40
codegen_flags: <defaults>
</compile_context>

<pallas_src>
import numpy as np
import jax
import jax.numpy as jnp
from jax import lax
from jax.experimental import pallas as pl
from jax.experimental.pallas import tpu as pltpu

EPS = 1e-6


# ------------------------------ Pallas kernel --------------------------------

def mstf_kernel(x_ref, s1_ref, sshift_ref, t1_ref, bm1_ref,
                s2_ref, t2_ref, bm2_ref, o_ref):
    ipg, H, WC = x_ref.shape          # images-per-block, rows, W*C lanes
    R = ipg * H
    WCo = o_ref.shape[-1]

    x = x_ref[...].reshape(R, WC)     # rows = images*H, lanes = W*C (dense)

    sdn = sshift_ref[0]               # (R,R): row r <- row r-1 (0 at image top)
    sup = sshift_ref[1]               # (R,R): row r <- row r+1 (0 at image bottom)

    def seg_layernorm(v, s_ref):
        # Channel-first LayerNorm per pixel.  s_ref is block-diagonal 1/nch,
        # so v @ s replicates the per-pixel mean across that pixel's lanes.
        u = jnp.dot(v, s_ref[...], preferred_element_type=jnp.float32)
        d = v - u
        var = jnp.dot(d * d, s_ref[...], preferred_element_type=jnp.float32)
        return d * lax.rsqrt(var + EPS)

    def conv3x3(v, t_ref, bm_ref):
        # 3x3 conv = sum over kernel rows dy of (row-shifted v) @ Toeplitz[dy].
        # W padding is implicit in the Toeplitz band; H padding / image
        # boundaries are the zero rows of sdn/sup.  LN affines + conv biases
        # are pre-folded into t_ref and the border-aware bias map bm_ref.
        v_dn = jnp.dot(sdn, v, preferred_element_type=jnp.float32)
        v_up = jnp.dot(sup, v, preferred_element_type=jnp.float32)
        acc = bm_ref[...]
        acc = acc + jnp.dot(v_dn, t_ref[0], preferred_element_type=jnp.float32)
        acc = acc + jnp.dot(v, t_ref[1], preferred_element_type=jnp.float32)
        acc = acc + jnp.dot(v_up, t_ref[2], preferred_element_type=jnp.float32)
        return acc

    g = seg_layernorm(x, s1_ref)                    # (R, W*C)   shared LN stats
    cat = conv3x3(g, t1_ref, bm1_ref)               # (R, W*3C)  == [X1|X2|X3]
    g2 = seg_layernorm(cat, s2_ref)                 # (R, W*3C)
    out = conv3x3(g2, t2_ref, bm2_ref)              # (R, W*Co)
    o_ref[...] = out.reshape(ipg, H, WCo)           # 128-lane dense store


def mstf_pallas(x_nhwc, packed, *, images_per_block=1):
    N, H, W, C = x_nhwc.shape
    s1, sshift, t1, bm1, s2, t2, bm2 = packed
    WC = W * C
    WCo = t2.shape[-1]
    Co = WCo // W
    ipg = images_per_block
    assert N % ipg == 0
    assert sshift.shape[-1] == ipg * H, "params packed for a different images_per_block"

    # Lane-dense view of the input: channels folded onto the 128-lane axis.
    x2d = x_nhwc.reshape(N, H, WC)

    def full_spec(a):
        nd = a.ndim
        return pl.BlockSpec(a.shape, lambda n, _nd=nd: (0,) * _nd)

    grid_spec = pltpu.PrefetchScalarGridSpec(
        num_scalar_prefetch=0,
        grid=(N // ipg,),
        in_specs=[pl.BlockSpec((ipg, H, WC), lambda n: (n, 0, 0))]
                 + [full_spec(a) for a in packed],
        out_specs=pl.BlockSpec((ipg, H, WCo), lambda n: (n, 0, 0)),
    )
    out2d = pl.pallas_call(
        mstf_kernel,
        out_shape=jax.ShapeDtypeStruct((N, H, WCo), jnp.float32),
        grid_spec=grid_spec,
        compiler_params=pltpu.CompilerParams(
            dimension_semantics=("parallel",),           # batch axis -> megacore
            vmem_limit_bytes=32 * 1024 * 1024),          # explicit budget (v7x)
    )(x2d, *packed)
    return out2d.reshape(N, H, W, Co)


# -------------------- parameter init / repacking (plain JAX/NumPy glue) ------

def init_params(key, C, Co):
    ks = jax.random.split(key, 16)
    n = lambda k, shape, s=0.1: s * jax.random.normal(k, shape, jnp.float32)
    return {
        # DWConv: Layer_norm(C) + Conv2d(C, C, 3, pad=1, groups=C)
        'ln_dwc_w': 1.0 + n(ks[0], (C,)), 'ln_dwc_b': n(ks[1], (C,)),
        'dwc_w': n(ks[2], (C, 1, 3, 3)), 'dwc_b': n(ks[3], (C,)),
        # PWConv: Layer_norm(C) + Conv2d(C, C, 1, pad=0)
        'ln_pwc_w': 1.0 + n(ks[4], (C,)), 'ln_pwc_b': n(ks[5], (C,)),
        'pwc_w': n(ks[6], (C, C, 1, 1)), 'pwc_b': n(ks[7], (C,)),
        # ConvNorm: Layer_norm(C) + Conv2d(C, C, 3, pad=1)
        'ln_conv_w': 1.0 + n(ks[8], (C,)), 'ln_conv_b': n(ks[9], (C,)),
        'conv_w': n(ks[10], (C, C, 3, 3)), 'conv_b': n(ks[11], (C,)),
        # LastConv: Layer_norm(3C) + Conv2d(3C, Co, 3, pad=1)
        'ln_last_w': 1.0 + n(ks[12], (3 * C,)), 'ln_last_b': n(ks[13], (3 * C,)),
        'last_w': n(ks[14], (Co, 3 * C, 3, 3)), 'last_b': n(ks[15], (Co,)),
    }


def pack_for_kernel(p, C, Co, H, W, images_per_block=1):
    """Fold the whole module into Toeplitz conv weights + bias maps (host-side)."""
    f32 = np.float32
    q = {k: np.asarray(v, f32) for k, v in p.items()}
    C3 = 3 * C
    R = images_per_block * H

    # Segmented per-pixel mean matrices: block-diagonal 1/nch, (W*nch, W*nch).
    def seg_mean(nch):
        return np.kron(np.eye(W, dtype=f32), np.full((nch, nch), 1.0 / nch, f32))
    s1 = seg_mean(C)
    s2 = seg_mean(C3)

    # Row-shift matrices (zero rows == zero padding along H / image boundaries).
    sdn = np.zeros((R, R), f32)
    sup = np.zeros((R, R), f32)
    for r in range(R):
        if r % H != 0:
            sdn[r, r - 1] = 1.0
        if r % H != H - 1:
            sup[r, r + 1] = 1.0
    sshift = np.stack([sdn, sup])                           # (2, R, R)

    # Per-tap weight blocks with the branch LayerNorm *scales* folded into the
    # input channels.  Stage-1 input is the shared normalized map g (C ch/pix);
    # stage-1 output channel order is [X1 | X2 | X3] (== torch.cat order).
    wblk1 = np.zeros((3, 3, C, C3), f32)
    for dy in range(3):
        for dx in range(3):
            # depthwise 3x3 (groups=C) branch -> out channels [0, C)
            wblk1[dy, dx, np.arange(C), np.arange(C)] = (
                q['ln_dwc_w'] * q['dwc_w'][:, 0, dy, dx])
            # dense 3x3 branch -> out channels [2C, 3C)
            wblk1[dy, dx, :, 2 * C:3 * C] = (
                q['ln_conv_w'][:, None] * q['conv_w'][:, :, dy, dx].T)
    # pointwise 1x1 branch -> out channels [C, 2C), center tap only
    wblk1[1, 1, :, C:2 * C] = q['ln_pwc_w'][:, None] * q['pwc_w'][:, :, 0, 0].T

    # Stage-2 (LastConv) blocks with the 3C LayerNorm scale folded in.
    wblk2 = np.zeros((3, 3, C3, Co), f32)
    for dy in range(3):
        for dx in range(3):
            wblk2[dy, dx] = q['ln_last_w'][:, None] * q['last_w'][:, :, dy, dx].T

    # W-direction Toeplitz matrices: one (W*cin, W*cout) band matrix per dy.
    # Out-of-image dx taps are simply absent -> implicit zero padding along W.
    def toeplitz(wblk, cin, cout):
        t = np.zeros((3, W * cin, W * cout), f32)
        for dy in range(3):
            for w in range(W):
                for dx in range(3):
                    wi = w + dx - 1
                    if 0 <= wi < W:
                        t[dy, wi * cin:(wi + 1) * cin,
                          w * cout:(w + 1) * cout] = wblk[dy, dx]
        return t
    t1 = toeplitz(wblk1, C, C3)          # (3, W*C , W*3C)
    t2 = toeplitz(wblk2, C3, Co)         # (3, W*3C, W*Co)

    # Border-aware bias maps = conv bias + conv(constant LayerNorm-bias image)
    # with zero padding (the LN bias rides on the conv *input*, so it vanishes
    # at padded taps -> effective bias varies near the image border).
    bw1 = np.zeros((3, 3, C3), f32)
    bw2 = np.zeros((3, 3, Co), f32)
    for dy in range(3):
        for dx in range(3):
            bw1[dy, dx, 0:C] = q['ln_dwc_b'] * q['dwc_w'][:, 0, dy, dx]
            bw1[dy, dx, 2 * C:3 * C] = q['conv_w'][:, :, dy, dx] @ q['ln_conv_b']
            bw2[dy, dx] = q['last_w'][:, :, dy, dx] @ q['ln_last_b']
    bw1[1, 1, C:2 * C] = q['pwc_w'][:, :, 0, 0] @ q['ln_pwc_b']

    def bias_map(bw, conv_bias, cout):
        bm = np.zeros((H, W, cout), f32)
        for h in range(H):
            for w in range(W):
                acc = conv_bias.astype(f32).copy()
                for dy in range(3):
                    for dx in range(3):
                        if 0 <= h + dy - 1 < H and 0 <= w + dx - 1 < W:
                            acc = acc + bw[dy, dx]
                bm[h, w] = acc
        return bm.reshape(H, W * cout)

    b1cat = np.concatenate([q['dwc_b'], q['pwc_b'], q['conv_b']])
    bm1 = np.tile(bias_map(bw1, b1cat, C3), (images_per_block, 1))    # (R, W*3C)
    bm2 = np.tile(bias_map(bw2, q['last_b'], Co), (images_per_block, 1))  # (R, W*Co)

    return tuple(jnp.asarray(a, jnp.float32)
                 for a in (s1, sshift, t1, bm1, s2, t2, bm2))


# -------------------- pure-JAX reference (for verification) ------------------

def _ln_channel(v, w, b):
    u = jnp.mean(v, axis=-1, keepdims=True)
    d = v - u
    s = jnp.mean(d * d, axis=-1, keepdims=True)
    return d * lax.rsqrt(s + EPS) * w + b


def _conv2d_nhwc(x, w_oihw, b, padding, groups=1):
    w_hwio = jnp.transpose(w_oihw, (2, 3, 1, 0))
    y = lax.conv_general_dilated(
        x, w_hwio, window_strides=(1, 1),
        padding=[(padding, padding), (padding, padding)],
        dimension_numbers=('NHWC', 'HWIO', 'NHWC'),
        feature_group_count=groups,
        precision=lax.Precision.HIGHEST)
    return y + b


def mstf_reference(x, p):
    C = x.shape[-1]
    x1 = _conv2d_nhwc(_ln_channel(x, p['ln_dwc_w'], p['ln_dwc_b']),
                      p['dwc_w'], p['dwc_b'], 1, groups=C)
    x2 = _conv2d_nhwc(_ln_channel(x, p['ln_pwc_w'], p['ln_pwc_b']),
                      p['pwc_w'], p['pwc_b'], 0)
    x3 = _conv2d_nhwc(_ln_channel(x, p['ln_conv_w'], p['ln_conv_b']),
                      p['conv_w'], p['conv_b'], 1)
    cat = jnp.concatenate([x1, x2, x3], axis=-1)
    return _conv2d_nhwc(_ln_channel(cat, p['ln_last_w'], p['ln_last_b']),
                        p['last_w'], p['last_b'], 1)


if __name__ == "__main__":
    C, Co = 4, 8          # In_Channels, Out_Channels
    N, H, W = 2, 16, 16   # NHWC here == torch NCHW (N, C, H, W) = (2, 4, 16, 16)
    key = jax.random.PRNGKey(0)
    kx, kp = jax.random.split(key)

    x = jax.random.normal(kx, (N, H, W, C), jnp.float32)   # NHWC input
    params = init_params(kp, C, Co)
    ref = np.asarray(mstf_reference(x, params))

    # images_per_block=1 -> grid=(N,) "parallel" (v7x megacore);
    # images_per_block=N -> single grid step (minimal per-step overhead, v5e/v6e).
    for ipb in (1, N):
        packed = pack_for_kernel(params, C, Co, H, W, images_per_block=ipb)
        out = jax.block_until_ready(mstf_pallas(x, packed, images_per_block=ipb))
        np.testing.assert_allclose(np.asarray(out), ref, rtol=2e-3, atol=2e-3)

    print("KERNEL_OK")
</pallas_src>

<mosaic_0001>
module attributes {stable_mosaic.version = 11 : i64} {
  func.func @mstf_kernel(%arg0: i32, %arg1: memref<1x16x64xf32, #tpu.memory_space<vmem>>, %arg2: memref<64x64xf32, #tpu.memory_space<vmem>>, %arg3: memref<2x16x16xf32, #tpu.memory_space<vmem>>, %arg4: memref<3x64x192xf32, #tpu.memory_space<vmem>>, %arg5: memref<16x192xf32, #tpu.memory_space<vmem>>, %arg6: memref<192x192xf32, #tpu.memory_space<vmem>>, %arg7: memref<3x192x128xf32, #tpu.memory_space<vmem>>, %arg8: memref<16x128xf32, #tpu.memory_space<vmem>>, %arg9: memref<1x16x128xf32, #tpu.memory_space<vmem>>) attributes {dimension_semantics = [#tpu.dimension_semantics<parallel>], iteration_bounds = array<i64: 2>, scalar_prefetch = 0 : i64, scratch_operands = 0 : i64, tpu.core_type = #tpu.core_type<tc>, window_params = [{transform_indices = @transform_0, window_bounds = array<i64: 1, 16, 64>}, {pipeline_mode = #tpu.pipeline_mode<synchronous>, transform_indices = @transform_1, window_bounds = array<i64: 64, 64>}, {pipeline_mode = #tpu.pipeline_mode<synchronous>, transform_indices = @transform_2, window_bounds = array<i64: 2, 16, 16>}, {pipeline_mode = #tpu.pipeline_mode<synchronous>, transform_indices = @transform_3, window_bounds = array<i64: 3, 64, 192>}, {pipeline_mode = #tpu.pipeline_mode<synchronous>, transform_indices = @transform_4, window_bounds = array<i64: 16, 192>}, {pipeline_mode = #tpu.pipeline_mode<synchronous>, transform_indices = @transform_5, window_bounds = array<i64: 192, 192>}, {pipeline_mode = #tpu.pipeline_mode<synchronous>, transform_indices = @transform_6, window_bounds = array<i64: 3, 192, 128>}, {pipeline_mode = #tpu.pipeline_mode<synchronous>, transform_indices = @transform_7, window_bounds = array<i64: 16, 128>}, {transform_indices = @transform_8, window_bounds = array<i64: 1, 16, 128>}]} {
    %c0 = arith.constant 0 : index
    %c0_0 = arith.constant 0 : index
    %c0_1 = arith.constant 0 : index
    %0 = vector.load %arg1[%c0, %c0_0, %c0_1] : memref<1x16x64xf32, #tpu.memory_space<vmem>>, vector<1x16x64xf32>
    %1 = vector.shape_cast %0 : vector<1x16x64xf32> to vector<16x64xf32>
    %c0_2 = arith.constant 0 : index
    %c0_3 = arith.constant 0 : index
    %c0_4 = arith.constant 0 : index
    %2 = vector.load %arg3[%c0_2, %c0_3, %c0_4] : memref<2x16x16xf32, #tpu.memory_space<vmem>>, vector<1x16x16xf32>
    %3 = vector.shape_cast %2 : vector<1x16x16xf32> to vector<16x16xf32>
    %c1 = arith.constant 1 : index
    %c0_5 = arith.constant 0 : index
    %c0_6 = arith.constant 0 : index
    %4 = vector.load %arg3[%c1, %c0_5, %c0_6] : memref<2x16x16xf32, #tpu.memory_space<vmem>>, vector<1x16x16xf32>
    %5 = vector.shape_cast %4 : vector<1x16x16xf32> to vector<16x16xf32>
    %c0_7 = arith.constant 0 : index
    %c0_8 = arith.constant 0 : index
    %6 = vector.load %arg2[%c0_7, %c0_8] : memref<64x64xf32, #tpu.memory_space<vmem>>, vector<64x64xf32>
    %cst = arith.constant dense<0.000000e+00> : vector<16x64xf32>
    %7 = tpu.matmul %1, %6, %cst {dimension_numbers = #tpu.dot_dimension_numbers<[1], [0], [0], [1], [0, 0, 1, 1], [], []>} : vector<16x64xf32>, vector<64x64xf32>, vector<16x64xf32> -> vector<16x64xf32>
    %8 = arith.subf %1, %7 : vector<16x64xf32>
    %9 = arith.mulf %8, %8 : vector<16x64xf32>
    %c0_9 = arith.constant 0 : index
    %c0_10 = arith.constant 0 : index
    %10 = vector.load %arg2[%c0_9, %c0_10] : memref<64x64xf32, #tpu.memory_space<vmem>>, vector<64x64xf32>
    %cst_11 = arith.constant dense<0.000000e+00> : vector<16x64xf32>
    %11 = tpu.matmul %9, %10, %cst_11 {dimension_numbers = #tpu.dot_dimension_numbers<[1], [0], [0], [1], [0, 0, 1, 1], [], []>} : vector<16x64xf32>, vector<64x64xf32>, vector<16x64xf32> -> vector<16x64xf32>
    %cst_12 = arith.constant 9.99999997E-7 : f32
    %12 = vector.broadcast %cst_12 : f32 to vector<16x64xf32>
    %13 = arith.addf %11, %12 : vector<16x64xf32>
    %14 = math.rsqrt %13 : vector<16x64xf32>
    %15 = arith.mulf %8, %14 : vector<16x64xf32>
    %cst_13 = arith.constant dense<0.000000e+00> : vector<16x64xf32>
    %16 = tpu.matmul %3, %15, %cst_13 {dimension_numbers = #tpu.dot_dimension_numbers<[1], [0], [0], [1], [0, 0, 1, 1], [], []>} : vector<16x16xf32>, vector<16x64xf32>, vector<16x64xf32> -> vector<16x64xf32>
    %cst_14 = arith.constant dense<0.000000e+00> : vector<16x64xf32>
    %17 = tpu.matmul %5, %15, %cst_14 {dimension_numbers = #tpu.dot_dimension_numbers<[1], [0], [0], [1], [0, 0, 1, 1], [], []>} : vector<16x16xf32>, vector<16x64xf32>, vector<16x64xf32> -> vector<16x64xf32>
    %c0_15 = arith.constant 0 : index
    %c0_16 = arith.constant 0 : index
    %18 = vector.load %arg5[%c0_15, %c0_16] : memref<16x192xf32, #tpu.memory_space<vmem>>, vector<16x192xf32>
    %c0_17 = arith.constant 0 : index
    %c0_18 = arith.constant 0 : index
    %c0_19 = arith.constant 0 : index
    %19 = vector.load %arg4[%c0_17, %c0_18, %c0_19] : memref<3x64x192xf32, #tpu.memory_space<vmem>>, vector<1x64x192xf32>
    %20 = vector.shape_cast %19 : vector<1x64x192xf32> to vector<64x192xf32>
    %cst_20 = arith.constant dense<0.000000e+00> : vector<16x192xf32>
    %21 = tpu.matmul %16, %20, %cst_20 {dimension_numbers = #tpu.dot_dimension_numbers<[1], [0], [0], [1], [0, 0, 1, 1], [], []>} : vector<16x64xf32>, vector<64x192xf32>, vector<16x192xf32> -> vector<16x192xf32>
    %22 = arith.addf %18, %21 : vector<16x192xf32>
    %c1_21 = arith.constant 1 : index
    %c0_22 = arith.constant 0 : index
    %c0_23 = arith.constant 0 : index
    %23 = vector.load %arg4[%c1_21, %c0_22, %c0_23] : memref<3x64x192xf32, #tpu.memory_space<vmem>>, vector<1x64x192xf32>
    %24 = vector.shape_cast %23 : vector<1x64x192xf32> to vector<64x192xf32>
    %cst_24 = arith.constant dense<0.000000e+00> : vector<16x192xf32>
    %25 = tpu.matmul %15, %24, %cst_24 {dimension_numbers = #tpu.dot_dimension_numbers<[1], [0], [0], [1], [0, 0, 1, 1], [], []>} : vector<16x64xf32>, vector<64x192xf32>, vector<16x192xf32> -> vector<16x192xf32>
    %26 = arith.addf %22, %25 : vector<16x192xf32>
    %c2 = arith.constant 2 : index
    %c0_25 = arith.constant 0 : index
    %c0_26 = arith.constant 0 : index
    %27 = vector.load %arg4[%c2, %c0_25, %c0_26] : memref<3x64x192xf32, #tpu.memory_space<vmem>>, vector<1x64x192xf32>
    %28 = vector.shape_cast %27 : vector<1x64x192xf32> to vector<64x192xf32>
    %cst_27 = arith.constant dense<0.000000e+00> : vector<16x192xf32>
    %29 = tpu.matmul %17, %28, %cst_27 {dimension_numbers = #tpu.dot_dimension_numbers<[1], [0], [0], [1], [0, 0, 1, 1], [], []>} : vector<16x64xf32>, vector<64x192xf32>, vector<16x192xf32> -> vector<16x192xf32>
    %30 = arith.addf %26, %29 : vector<16x192xf32>
    %c0_28 = arith.constant 0 : index
    %c0_29 = arith.constant 0 : index
    %31 = vector.load %arg6[%c0_28, %c0_29] : memref<192x192xf32, #tpu.memory_space<vmem>>, vector<192x192xf32>
    %cst_30 = arith.constant dense<0.000000e+00> : vector<16x192xf32>
    %32 = tpu.matmul %30, %31, %cst_30 {dimension_numbers = #tpu.dot_dimension_numbers<[1], [0], [0], [1], [0, 0, 1, 1], [], []>} : vector<16x192xf32>, vector<192x192xf32>, vector<16x192xf32> -> vector<16x192xf32>
    %33 = arith.subf %30, %32 : vector<16x192xf32>
    %34 = arith.mulf %33, %33 : vector<16x192xf32>
    %c0_31 = arith.constant 0 : index
    %c0_32 = arith.constant 0 : index
    %35 = vector.load %arg6[%c0_31, %c0_32] : memref<192x192xf32, #tpu.memory_space<vmem>>, vector<192x192xf32>
    %cst_33 = arith.constant dense<0.000000e+00> : vector<16x192xf32>
    %36 = tpu.matmul %34, %35, %cst_33 {dimension_numbers = #tpu.dot_dimension_numbers<[1], [0], [0], [1], [0, 0, 1, 1], [], []>} : vector<16x192xf32>, vector<192x192xf32>, vector<16x192xf32> -> vector<16x192xf32>
    %cst_34 = arith.constant 9.99999997E-7 : f32
    %37 = vector.broadcast %cst_34 : f32 to vector<16x192xf32>
    %38 = arith.addf %36, %37 : vector<16x192xf32>
    %39 = math.rsqrt %38 : vector<16x192xf32>
    %40 = arith.mulf %33, %39 : vector<16x192xf32>
    %cst_35 = arith.constant dense<0.000000e+00> : vector<16x192xf32>
    %41 = tpu.matmul %3, %40, %cst_35 {dimension_numbers = #tpu.dot_dimension_numbers<[1], [0], [0], [1], [0, 0, 1, 1], [], []>} : vector<16x16xf32>, vector<16x192xf32>, vector<16x192xf32> -> vector<16x192xf32>
    %cst_36 = arith.constant dense<0.000000e+00> : vector<16x192xf32>
    %42 = tpu.matmul %5, %40, %cst_36 {dimension_numbers = #tpu.dot_dimension_numbers<[1], [0], [0], [1], [0, 0, 1, 1], [], []>} : vector<16x16xf32>, vector<16x192xf32>, vector<16x192xf32> -> vector<16x192xf32>
    %c0_37 = arith.constant 0 : index
    %c0_38 = arith.constant 0 : index
    %43 = vector.load %arg8[%c0_37, %c0_38] : memref<16x128xf32, #tpu.memory_space<vmem>>, vector<16x128xf32>
    %c0_39 = arith.constant 0 : index
    %c0_40 = arith.constant 0 : index
    %c0_41 = arith.constant 0 : index
    %44 = vector.load %arg7[%c0_39, %c0_40, %c0_41] : memref<3x192x128xf32, #tpu.memory_space<vmem>>, vector<1x192x128xf32>
    %45 = vector.shape_cast %44 : vector<1x192x128xf32> to vector<192x128xf32>
    %cst_42 = arith.constant dense<0.000000e+00> : vector<16x128xf32>
    %46 = tpu.matmul %41, %45, %cst_42 {dimension_numbers = #tpu.dot_dimension_numbers<[1], [0], [0], [1], [0, 0, 1, 1], [], []>} : vector<16x192xf32>, vector<192x128xf32>, vector<16x128xf32> -> vector<16x128xf32>
    %47 = arith.addf %43, %46 : vector<16x128xf32>
    %c1_43 = arith.constant 1 : index
    %c0_44 = arith.constant 0 : index
    %c0_45 = arith.constant 0 : index
    %48 = vector.load %arg7[%c1_43, %c0_44, %c0_45] : memref<3x192x128xf32, #tpu.memory_space<vmem>>, vector<1x192x128xf32>
    %49 = vector.shape_cast %48 : vector<1x192x128xf32> to vector<192x128xf32>
    %cst_46 = arith.constant dense<0.000000e+00> : vector<16x128xf32>
    %50 = tpu.matmul %40, %49, %cst_46 {dimension_numbers = #tpu.dot_dimension_numbers<[1], [0], [0], [1], [0, 0, 1, 1], [], []>} : vector<16x192xf32>, vector<192x128xf32>, vector<16x128xf32> -> vector<16x128xf32>
    %51 = arith.addf %47, %50 : vector<16x128xf32>
    %c2_47 = arith.constant 2 : index
    %c0_48 = arith.constant 0 : index
    %c0_49 = arith.constant 0 : index
    %52 = vector.load %arg7[%c2_47, %c0_48, %c0_49] : memref<3x192x128xf32, #tpu.memory_space<vmem>>, vector<1x192x128xf32>
    %53 = vector.shape_cast %52 : vector<1x192x128xf32> to vector<192x128xf32>
    %cst_50 = arith.constant dense<0.000000e+00> : vector<16x128xf32>
    %54 = tpu.matmul %42, %53, %cst_50 {dimension_numbers = #tpu.dot_dimension_numbers<[1], [0], [0], [1], [0, 0, 1, 1], [], []>} : vector<16x192xf32>, vector<192x128xf32>, vector<16x128xf32> -> vector<16x128xf32>
    %55 = arith.addf %51, %54 : vector<16x128xf32>
    %56 = vector.shape_cast %55 : vector<16x128xf32> to vector<1x16x128xf32>
    %c0_51 = arith.constant 0 : index
    %c0_52 = arith.constant 0 : index
    %c0_53 = arith.constant 0 : index
    %57 = vector.load %arg9[%c0_51, %c0_52, %c0_53] : memref<1x16x128xf32, #tpu.memory_space<vmem>>, vector<1x16x128xf32>
    tpu.vector_store %arg9[%c0_51, %c0_52, %c0_53], %56 {strides = array<i32>} : memref<1x16x128xf32, #tpu.memory_space<vmem>>, vector<1x16x128xf32>,
    return
  }
  func.func @transform_0(%arg0: i32) -> (i32, i32, i32) {
    %c0_i32 = arith.constant 0 : i32
    %c0_i32_0 = arith.constant 0 : i32
    %c0_i32_1 = arith.constant 0 : i32
    return %arg0, %c0_i32, %c0_i32_0 : i32, i32, i32
  }
  func.func @transform_1(%arg0: i32) -> (i32, i32) {
    %c0_i32 = arith.constant 0 : i32
    %c0_i32_0 = arith.constant 0 : i32
    %c0_i32_1 = arith.constant 0 : i32
    return %c0_i32, %c0_i32_0 : i32, i32
  }
  func.func @transform_2(%arg0: i32) -> (i32, i32, i32) {
    %c0_i32 = arith.constant 0 : i32
    %c0_i32_0 = arith.constant 0 : i32
    %c0_i32_1 = arith.constant 0 : i32
    %c0_i32_2 = arith.constant 0 : i32
    return %c0_i32, %c0_i32_0, %c0_i32_1 : i32, i32, i32
  }
  func.func @transform_3(%arg0: i32) -> (i32, i32, i32) {
    %c0_i32 = arith.constant 0 : i32
    %c0_i32_0 = arith.constant 0 : i32
    %c0_i32_1 = arith.constant 0 : i32
    %c0_i32_2 = arith.constant 0 : i32
    return %c0_i32, %c0_i32_0, %c0_i32_1 : i32, i32, i32
  }
  func.func @transform_4(%arg0: i32) -> (i32, i32) {
    %c0_i32 = arith.constant 0 : i32
    %c0_i32_0 = arith.constant 0 : i32
    %c0_i32_1 = arith.constant 0 : i32
    return %c0_i32, %c0_i32_0 : i32, i32
  }
  func.func @transform_5(%arg0: i32) -> (i32, i32) {
    %c0_i32 = arith.constant 0 : i32
    %c0_i32_0 = arith.constant 0 : i32
    %c0_i32_1 = arith.constant 0 : i32
    return %c0_i32, %c0_i32_0 : i32, i32
  }
  func.func @transform_6(%arg0: i32) -> (i32, i32, i32) {
    %c0_i32 = arith.constant 0 : i32
    %c0_i32_0 = arith.constant 0 : i32
    %c0_i32_1 = arith.constant 0 : i32
    %c0_i32_2 = arith.constant 0 : i32
    return %c0_i32, %c0_i32_0, %c0_i32_1 : i32, i32, i32
  }
  func.func @transform_7(%arg0: i32) -> (i32, i32) {
    %c0_i32 = arith.constant 0 : i32
    %c0_i32_0 = arith.constant 0 : i32
    %c0_i32_1 = arith.constant 0 : i32
    return %c0_i32, %c0_i32_0 : i32, i32
  }
  func.func @transform_8(%arg0: i32) -> (i32, i32, i32) {
    %c0_i32 = arith.constant 0 : i32
    %c0_i32_0 = arith.constant 0 : i32
    %c0_i32_1 = arith.constant 0 : i32
    return %arg0, %c0_i32, %c0_i32_0 : i32, i32, i32
  }
}

</mosaic_0001>

<llo_original>
// kernel: tpu_custom_call.1
$region0: #{tpu_custom_call.1}
  #allocation0 [shape = 'u32[]', space=smem, size = 0x4, offset = 0x4, fixed_abs, tag = 'smem constant byte address 0x4 - core index']
  #allocation1 [shape = 'u32[144,128]{1,0:T(1,128)}', space=vmem, size = 0x12000, scoped, tag = 'internal scratch']
  %s0 = inlined_call_operand.hbm [shape: f32[2,16,64], index: 0, kind: input, shape index: {}]
  %s1 = inlined_call_operand.hbm [shape: f32[64,64], index: 1, kind: input, shape index: {}]
  %s2 = inlined_call_operand.hbm [shape: f32[2,16,16], index: 2, kind: input, shape index: {}]
  %s3 = inlined_call_operand.hbm [shape: f32[3,64,192], index: 3, kind: input, shape index: {}]
  %s4 = inlined_call_operand.hbm [shape: f32[16,192], index: 4, kind: input, shape index: {}]
  %s5 = inlined_call_operand.hbm [shape: f32[192,192], index: 5, kind: input, shape index: {}]
  %s6 = inlined_call_operand.hbm [shape: f32[3,192,128], index: 6, kind: input, shape index: {}]
  %s7 = inlined_call_operand.hbm [shape: f32[16,128], index: 7, kind: input, shape index: {}]
  %s8 = inlined_call_operand.hbm [shape: f32[2,16,128], index: 8, kind: output, shape index: {}]
  %s9 = sld [smem:[#allocation0]]
  $region97: #{tpu_custom_call.1} parent=0
    _
  %s11 = ssub.s32 1, %s9
  %s12 = scalar_select 0, %s11, %s9
  $region1: #{tpu_custom_call.1} parent=0
    #allocation2 [shape = 'u8[16384]{0}', space=vmem, size = 0x4000, scoped, tag = 'input window, operand 0']
    #allocation3 [shape = 's32[2]{0}', space=sflag, size = 0x8, scoped, tag = 'scoped memory for tpu_custom_call.1']
    #allocation4 [shape = 's32[2]{0}', space=sflag, size = 0x8, scoped, tag = 'scoped memory for tpu_custom_call.1']
    #allocation5 [shape = 'u8[32768]{0}', space=vmem, size = 0x8000, scoped, tag = 'input window, operand 1, single buffered']
    #allocation6 [shape = 's32[1]{0}', space=sflag, size = 0x4, scoped, tag = 'scoped memory for tpu_custom_call.1']
    #allocation7 [shape = 'u8[16384]{0}', space=vmem, size = 0x4000, scoped, tag = 'input window, operand 2, single buffered']
    #allocation8 [shape = 'u8[196608]{0}', space=vmem, size = 0x30000, scoped, tag = 'input window, operand 3, single buffered']
    #allocation9 [shape = 's32[1]{0}', space=sflag, size = 0x4, scoped, tag = 'scoped memory for tpu_custom_call.1']
    #allocation10 [shape = 'u8[16384]{0}', space=vmem, size = 0x4000, scoped, tag = 'input window, operand 4, single buffered']
    #allocation11 [shape = 'u8[196608]{0}', space=vmem, size = 0x30000, scoped, tag = 'input window, operand 5, single buffered']
    #allocation12 [shape = 's32[1]{0}', space=sflag, size = 0x4, scoped, tag = 'scoped memory for tpu_custom_call.1']
    #allocation13 [shape = 'u8[294912]{0}', space=vmem, size = 0x48000, scoped, tag = 'input window, operand 6, single buffered']
    #allocation14 [shape = 'u8[8192]{0}', space=vmem, size = 0x2000, scoped, tag = 'input window, operand 7, single buffered']
    #allocation15 [shape = 's32[1]{0}', space=sflag, size = 0x4, scoped, tag = 'scoped memory for tpu_custom_call.1']
    #allocation16 [shape = 'u8[16384]{0}', space=vmem, size = 0x4000, scoped, tag = 'output window, operand 0']
    %13 = vsyncpa [#allocation3], 0
    %s14 = scalar_lea.sflag [#allocation3], 1
    %15 = vsyncpa %s14, 0
    %16 = vsyncpa [#allocation6], 0
    %17 = vsyncpa [#allocation9], 0
    %18 = vsyncpa [#allocation12], 0
    %19 = vsyncpa [#allocation15], 0
    %20 = vsyncpa [#allocation4], 0
    %s21 = scalar_lea.sflag [#allocation4], 1
    %22 = vsyncpa %s21, 0
    loop: start=0, step=1, limit=4
    $region2: #{tpu_custom_call.1} parent=1 // loop_pre_header
      _
    $region3: #{tpu_custom_call.1} parent=1 // loop_header
      %s24 = sphi 0, %s28
      %p25 = scmp.ge.s32.totalorder %s24, 4
      %s34 = sphi 0, %s36
      %s37 = sphi 0, %s34
      %s38 = sphi 0, %s37
      %s54 = sphi 0, %s38
      %s58 = sphi 0, %s58
      %s60 = sphi 0, %s58
      %s61 = sphi 0, %s60
      %s75 = sphi 0, %s61
      %s79 = sphi 0, %s79
      %s81 = sphi 0, %s79
      %s82 = sphi 0, %s81
      %s96 = sphi 0, %s82
      %s100 = sphi 0, %s100
      %s102 = sphi 0, %s100
      %s103 = sphi 0, %s102
      %s117 = sphi 0, %s103
      %s121 = sphi 0, %s121
      %s123 = sphi 0, %s121
      %s124 = sphi 0, %s123
      %s138 = sphi 0, %s124
      %s142 = sphi 0, %s142
      %s144 = sphi 0, %s142
      %s145 = sphi 0, %s144
      %s159 = sphi 0, %s145
      %s163 = sphi 0, %s163
      %s165 = sphi 0, %s163
      %s166 = sphi 0, %s165
      %s180 = sphi 0, %s166
      %s184 = sphi 0, %s184
      %s186 = sphi 0, %s184
      %s187 = sphi 0, %s186
      %s201 = sphi 0, %s187
      %s207 = sphi 0, %s209
      %s210 = sphi 0, %s207
      %s211 = sphi 0, %s210
      %s227 = sphi 0, %s211
    $region4: #{tpu_custom_call.1} parent=1 // loop_header_branch
      %27 = sbr.rel (%p25) target = $region8
    $region5: #{tpu_custom_call.1} parent=1 // loop_body
      %s29 = ssub.s32 %s24, 1
      %s30 = ssub.s32 %s24, 2
      %s31 = sadd.s32 %s24, 1
      %s32 = ssub.s32 %s24, %s31
      %p33 = scmp.eq.s32.totalorder %s32, 0
      %s35 = sadd.s32 %s34, 1
      %s36 = scalar_select %p33, %s34, %s35
      %p39 = pneg %p33
      %p40 = scmp.eq.s32.totalorder %s24, 1
      %p41 = por %p39, %p40
      %p42 = scmp.ne.s32.totalorder %s34, %s37
      %p43 = scmp.eq.s32.totalorder %s24, 0
      %p44 = por %p42, %p43
      %p45 = scmp.ne.s32.totalorder %s34, %s37
      %p46 = scmp.eq.s32.totalorder %s29, 1
      %p47 = por %p45, %p46
      %p48 = scmp.ne.s32.totalorder %s37, %s38
      %p49 = scmp.eq.s32.totalorder %s29, 0
      %p50 = por %p48, %p49
      %p51 = scmp.ne.s32.totalorder %s37, %s38
      %p52 = scmp.eq.s32.totalorder %s30, 1
      %p53 = por %p51, %p52
      %p55 = scmp.ne.s32.totalorder %s38, %s54
      %p56 = scmp.eq.s32.totalorder %s30, 0
      %p57 = por %p55, %p56
      %s59 = sadd.s32 %s58, 1
      %p62 = scmp.eq.s32.totalorder %s24, 1
      %p63 = scmp.ne.s32.totalorder %s58, %s60
      %p64 = scmp.eq.s32.totalorder %s24, 0
      %p65 = por %p63, %p64
      %p66 = scmp.ne.s32.totalorder %s58, %s60
      %p67 = scmp.eq.s32.totalorder %s29, 1
      %p68 = por %p66, %p67
      %p69 = scmp.ne.s32.totalorder %s60, %s61
      %p70 = scmp.eq.s32.totalorder %s29, 0
      %p71 = por %p69, %p70
      %p72 = scmp.ne.s32.totalorder %s60, %s61
      %p73 = scmp.eq.s32.totalorder %s30, 1
      %p74 = por %p72, %p73
      %p76 = scmp.ne.s32.totalorder %s61, %s75
      %p77 = scmp.eq.s32.totalorder %s30, 0
      %p78 = por %p76, %p77
      %s80 = sadd.s32 %s79, 1
      %p83 = scmp.eq.s32.totalorder %s24, 1
      %p84 = scmp.ne.s32.totalorder %s79, %s81
      %p85 = scmp.eq.s32.totalorder %s24, 0
      %p86 = por %p84, %p85
      %p87 = scmp.ne.s32.totalorder %s79, %s81
      %p88 = scmp.eq.s32.totalorder %s29, 1
      %p89 = por %p87, %p88
      %p90 = scmp.ne.s32.totalorder %s81, %s82
      %p91 = scmp.eq.s32.totalorder %s29, 0
      %p92 = por %p90, %p91
      %p93 = scmp.ne.s32.totalorder %s81, %s82
      %p94 = scmp.eq.s32.totalorder %s30, 1
      %p95 = por %p93, %p94
      %p97 = scmp.ne.s32.totalorder %s82, %s96
      %p98 = scmp.eq.s32.totalorder %s30, 0
      %p99 = por %p97, %p98
      %s101 = sadd.s32 %s100, 1
      %p104 = scmp.eq.s32.totalorder %s24, 1
      %p105 = scmp.ne.s32.totalorder %s100, %s102
      %p106 = scmp.eq.s32.totalorder %s24, 0
      %p107 = por %p105, %p106
      %p108 = scmp.ne.s32.totalorder %s100, %s102
      %p109 = scmp.eq.s32.totalorder %s29, 1
      %p110 = por %p108, %p109
      %p111 = scmp.ne.s32.totalorder %s102, %s103
      %p112 = scmp.eq.s32.totalorder %s29, 0
      %p113 = por %p111, %p112
      %p114 = scmp.ne.s32.totalorder %s102, %s103
      %p115 = scmp.eq.s32.totalorder %s30, 1
      %p116 = por %p114, %p115
      %p118 = scmp.ne.s32.totalorder %s103, %s117
      %p119 = scmp.eq.s32.totalorder %s30, 0
      %p120 = por %p118, %p119
      %s122 = sadd.s32 %s121, 1
      %p125 = scmp.eq.s32.totalorder %s24, 1
      %p126 = scmp.ne.s32.totalorder %s121, %s123
      %p127 = scmp.eq.s32.totalorder %s24, 0
      %p128 = por %p126, %p127
      %p129 = scmp.ne.s32.totalorder %s121, %s123
      %p130 = scmp.eq.s32.totalorder %s29, 1
      %p131 = por %p129, %p130
      %p132 = scmp.ne.s32.totalorder %s123, %s124
      %p133 = scmp.eq.s32.totalorder %s29, 0
      %p134 = por %p132, %p133
      %p135 = scmp.ne.s32.totalorder %s123, %s124
      %p136 = scmp.eq.s32.totalorder %s30, 1
      %p137 = por %p135, %p136
      %p139 = scmp.ne.s32.totalorder %s124, %s138
      %p140 = scmp.eq.s32.totalorder %s30, 0
      %p141 = por %p139, %p140
      %s143 = sadd.s32 %s142, 1
      %p146 = scmp.eq.s32.totalorder %s24, 1
      %p147 = scmp.ne.s32.totalorder %s142, %s144
      %p148 = scmp.eq.s32.totalorder %s24, 0
      %p149 = por %p147, %p148
      %p150 = scmp.ne.s32.totalorder %s142, %s144
      %p151 = scmp.eq.s32.totalorder %s29, 1
      %p152 = por %p150, %p151
      %p153 = scmp.ne.s32.totalorder %s144, %s145
      %p154 = scmp.eq.s32.totalorder %s29, 0
      %p155 = por %p153, %p154
      %p156 = scmp.ne.s32.totalorder %s144, %s145
      %p157 = scmp.eq.s32.totalorder %s30, 1
      %p158 = por %p156, %p157
      %p160 = scmp.ne.s32.totalorder %s145, %s159
      %p161 = scmp.eq.s32.totalorder %s30, 0
      %p162 = por %p160, %p161
      %s164 = sadd.s32 %s163, 1
      %p167 = scmp.eq.s32.totalorder %s24, 1
      %p168 = scmp.ne.s32.totalorder %s163, %s165
      %p169 = scmp.eq.s32.totalorder %s24, 0
      %p170 = por %p168, %p169
      %p171 = scmp.ne.s32.totalorder %s163, %s165
      %p172 = scmp.eq.s32.totalorder %s29, 1
      %p173 = por %p171, %p172
      %p174 = scmp.ne.s32.totalorder %s165, %s166
      %p175 = scmp.eq.s32.totalorder %s29, 0
      %p176 = por %p174, %p175
      %p177 = scmp.ne.s32.totalorder %s165, %s166
      %p178 = scmp.eq.s32.totalorder %s30, 1
      %p179 = por %p177, %p178
      %p181 = scmp.ne.s32.totalorder %s166, %s180
      %p182 = scmp.eq.s32.totalorder %s30, 0
      %p183 = por %p181, %p182
      %s185 = sadd.s32 %s184, 1
      %p188 = scmp.eq.s32.totalorder %s24, 1
      %p189 = scmp.ne.s32.totalorder %s184, %s186
      %p190 = scmp.eq.s32.totalorder %s24, 0
      %p191 = por %p189, %p190
      %p192 = scmp.ne.s32.totalorder %s184, %s186
      %p193 = scmp.eq.s32.totalorder %s29, 1
      %p194 = por %p192, %p193
      %p195 = scmp.ne.s32.totalorder %s186, %s187
      %p196 = scmp.eq.s32.totalorder %s29, 0
      %p197 = por %p195, %p196
      %p198 = scmp.ne.s32.totalorder %s186, %s187
      %p199 = scmp.eq.s32.totalorder %s30, 1
      %p200 = por %p198, %p199
      %p202 = scmp.ne.s32.totalorder %s187, %s201
      %p203 = scmp.eq.s32.totalorder %s30, 0
      %p204 = por %p202, %p203
      %s205 = ssub.s32 %s24, %s31
      %p206 = scmp.eq.s32.totalorder %s205, 0
      %s208 = sadd.s32 %s207, 1
      %s209 = scalar_select %p206, %s207, %s208
      %p212 = pneg %p206
      %p213 = scmp.eq.s32.totalorder %s24, 1
      %p214 = por %p212, %p213
      %p215 = scmp.ne.s32.totalorder %s207, %s210
      %p216 = scmp.eq.s32.totalorder %s24, 0
      %p217 = por %p215, %p216
      %p218 = scmp.ne.s32.totalorder %s207, %s210
      %p219 = scmp.eq.s32.totalorder %s29, 1
      %p220 = por %p218, %p219
      %p221 = scmp.ne.s32.totalorder %s210, %s211
      %p222 = scmp.eq.s32.totalorder %s29, 0
      %p223 = por %p221, %p222
      %p224 = scmp.ne.s32.totalorder %s210, %s211
      %p225 = scmp.eq.s32.totalorder %s30, 1
      %p226 = por %p224, %p225
      %p228 = scmp.ne.s32.totalorder %s211, %s227
      %p229 = scmp.eq.s32.totalorder %s30, 0
      %p230 = por %p228, %p229
      %p231 = scmp.le.s32.totalorder 1, %s24
      %p232 = scmp.lt.s32.totalorder %s24, 3
      %p233 = pnand %p231, %p232
      %p234 = pneg %p233
      // Predicated region
      $region9: #{tpu_custom_call.1} parent=5 // pred_check
        _
      $region10: #{tpu_custom_call.1} parent=5 // pred_check_branch
        %236 = sbr.rel (%p233) target = $region12
      $region11: #{tpu_custom_call.1} parent=5 // pred_region
        %s237 = ssub.s32 %s24, 1
        // Predicated region
        $region13: #{tpu_custom_call.1} parent=11 // pred_check
          %p238 = pneg %p71
        $region14: #{tpu_custom_call.1} parent=11 // pred_check_branch
          %240 = sbr.rel (%p238) target = $region16
        $region15: #{tpu_custom_call.1} parent=11 // pred_region
          %s242 = ssub.s32 1024, 1024
          %243 = vsyncadd [#allocation6], %s242
          %s244 = sshll.u32 [#allocation5], 4
          %s245 = int_to_ptr.vmem [resolvable:$true] %s244
          %250 = dma.hbm_to_vmem [thread:$0]  %s1, 1024, %s245, [#allocation6], 128, 128, 8
        $region16: #{tpu_custom_call.1} parent=11 // pred_fallthru
          _
        // Predicated region
        $region17: #{tpu_custom_call.1} parent=11 // pred_check
          %p251 = pneg %p92
        $region18: #{tpu_custom_call.1} parent=11 // pred_check_branch
          %253 = sbr.rel (%p251) target = $region20
        $region19: #{tpu_custom_call.1} parent=11 // pred_region
          %s255 = ssub.s32 512, 512
          %256 = vsyncadd [#allocation6], %s255
          %s257 = sshll.u32 [#allocation7], 4
          %s258 = int_to_ptr.vmem [resolvable:$true] %s257
          %263 = dma.hbm_to_vmem [thread:$0]  %s2, 512, %s258, [#allocation6], 128, 128, 8
        $region20: #{tpu_custom_call.1} parent=11 // pred_fallthru
          _
        // Predicated region
        $region21: #{tpu_custom_call.1} parent=11 // pred_check
          %p264 = pneg %p113
        $region22: #{tpu_custom_call.1} parent=11 // pred_check_branch
          %266 = sbr.rel (%p264) target = $region24
        $region23: #{tpu_custom_call.1} parent=11 // pred_region
          %s268 = ssub.s32 6144, 6144
          %269 = vsyncadd [#allocation9], %s268
          %s270 = sshll.u32 [#allocation8], 4
          %s271 = int_to_ptr.vmem [resolvable:$true] %s270
          %276 = dma.hbm_to_vmem [thread:$0]  %s3, 6144, %s271, [#allocation9], 256, 256, 16
        $region24: #{tpu_custom_call.1} parent=11 // pred_fallthru
          _
        // Predicated region
        $region25: #{tpu_custom_call.1} parent=11 // pred_check
          %p277 = pneg %p134
        $region26: #{tpu_custom_call.1} parent=11 // pred_check_branch
          %279 = sbr.rel (%p277) target = $region28
        $region27: #{tpu_custom_call.1} parent=11 // pred_region
          %s281 = ssub.s32 512, 512
          %282 = vsyncadd [#allocation9], %s281
          %s283 = sshll.u32 [#allocation10], 4
          %s284 = int_to_ptr.vmem [resolvable:$true] %s283
          %289 = dma.hbm_to_vmem [thread:$0]  %s4, 512, %s284, [#allocation9], 256, 256, 16
        $region28: #{tpu_custom_call.1} parent=11 // pred_fallthru
          _
        // Predicated region
        $region29: #{tpu_custom_call.1} parent=11 // pred_check
          %p290 = pneg %p155
        $region30: #{tpu_custom_call.1} parent=11 // pred_check_branch
          %292 = sbr.rel (%p290) target = $region32
        $region31: #{tpu_custom_call.1} parent=11 // pred_region
          %s294 = ssub.s32 6144, 6144
          %295 = vsyncadd [#allocation12], %s294
          %s296 = sshll.u32 [#allocation11], 4
          %s297 = int_to_ptr.vmem [resolvable:$true] %s296
          %302 = dma.hbm_to_vmem [thread:$0]  %s5, 6144, %s297, [#allocation12], 256, 256, 16
        $region32: #{tpu_custom_call.1} parent=11 // pred_fallthru
          _
        // Predicated region
        $region33: #{tpu_custom_call.1} parent=11 // pred_check
          %p303 = pneg %p176
        $region34: #{tpu_custom_call.1} parent=11 // pred_check_branch
          %305 = sbr.rel (%p303) target = $region36
        $region35: #{tpu_custom_call.1} parent=11 // pred_region
          %s307 = ssub.s32 9216, 9216
          %308 = vsyncadd [#allocation12], %s307
          %s309 = sshll.u32 [#allocation13], 4
          %s310 = int_to_ptr.vmem [resolvable:$true] %s309
          %315 = dma.hbm_to_vmem [thread:$0]  %s6, 9216, %s310, [#allocation12], 128, 128, 8
        $region36: #{tpu_custom_call.1} parent=11 // pred_fallthru
          _
        // Predicated region
        $region37: #{tpu_custom_call.1} parent=11 // pred_check
          %p316 = pneg %p197
        $region38: #{tpu_custom_call.1} parent=11 // pred_check_branch
          %318 = sbr.rel (%p316) target = $region40
        $region39: #{tpu_custom_call.1} parent=11 // pred_region
          %s320 = ssub.s32 256, 256
          %321 = vsyncadd [#allocation15], %s320
          %s322 = sshll.u32 [#allocation14], 4
          %s323 = int_to_ptr.vmem [resolvable:$true] %s322
          %328 = dma.hbm_to_vmem [thread:$0]  %s7, 256, %s323, [#allocation15], 128, 128, 8
        $region40: #{tpu_custom_call.1} parent=11 // pred_fallthru
          _
      $region12: #{tpu_custom_call.1} parent=5 // pred_fallthru
        _
      %p329 = scmp.lt.s32.totalorder %s24, 2
      // Predicated region
      $region41: #{tpu_custom_call.1} parent=5 // pred_check
        %p330 = pneg %p329
      $region42: #{tpu_custom_call.1} parent=5 // pred_check_branch
        %332 = sbr.rel (%p330) target = $region44
      $region43: #{tpu_custom_call.1} parent=5 // pred_region
        // Predicated region
        $region45: #{tpu_custom_call.1} parent=43 // pred_check
          %p333 = pneg %p44
        $region46: #{tpu_custom_call.1} parent=43 // pred_check_branch
          %335 = sbr.rel (%p333) target = $region48
        $region47: #{tpu_custom_call.1} parent=43 // pred_region
          %s336 = sand.u32 %s34, 1
          %s337 = scalar_lea.sflag [#allocation3], %s336
          %s338 = sand.u32 %s34, 1
          %s339 = smul.addr %s338, 16
          %s340 = scalar_lea.vmem [#allocation2], %s339
          %s342 = ssub.s32 256, 256
          %343 = vsyncadd %s337, %s342
          %s344 = smul.addr %s24, 2
          %s345 = smul.addr %s344, 128
          %s346 = scalar_lea.hbm %s0, %s345
          %s347 = sshll.u32 %s340, 4
          %s348 = int_to_ptr.vmem [resolvable:$true] %s347
          %353 = dma.hbm_to_vmem [thread:$0]  %s346, 256, %s348, %s337, 128, 128, 8
        $region48: #{tpu_custom_call.1} parent=43 // pred_fallthru
          _
      $region44: #{tpu_custom_call.1} parent=5 // pred_fallthru
        _
      %p354 = scmp.le.s32.totalorder 1, %s24
      %p355 = scmp.lt.s32.totalorder %s24, 3
      %p356 = pnand %p354, %p355
      %p357 = pneg %p356
      // Predicated region
      $region49: #{tpu_custom_call.1} parent=5 // pred_check
        _
      $region50: #{tpu_custom_call.1} parent=5 // pred_check_branch
        %359 = sbr.rel (%p356) target = $region52
      $region51: #{tpu_custom_call.1} parent=5 // pred_region
        %s360 = ssub.s32 %s24, 1
        %s361 = sand.u32 %s37, 1
        %s362 = scalar_lea.sflag [#allocation3], %s361
        %s363 = sand.u32 %s37, 1
        %s364 = smul.addr %s363, 16
        %s365 = scalar_lea.vmem [#allocation2], %s364
        // Predicated region
        $region53: #{tpu_custom_call.1} parent=51 // pred_check
          %p366 = pneg %p50
        $region54: #{tpu_custom_call.1} parent=51 // pred_check_branch
          %368 = sbr.rel (%p366) target = $region56
        $region55: #{tpu_custom_call.1} parent=51 // pred_region
          %369 = dma.done %s362, 256
        $region56: #{tpu_custom_call.1} parent=51 // pred_fallthru
          _
        // Predicated region
        $region57: #{tpu_custom_call.1} parent=51 // pred_check
          %p370 = pneg %p71
        $region58: #{tpu_custom_call.1} parent=51 // pred_check_branch
          %372 = sbr.rel (%p370) target = $region60
        $region59: #{tpu_custom_call.1} parent=51 // pred_region
          %373 = dma.done [#allocation6], 1024
        $region60: #{tpu_custom_call.1} parent=51 // pred_fallthru
          _
        // Predicated region
        $region61: #{tpu_custom_call.1} parent=51 // pred_check
          %p374 = pneg %p92
        $region62: #{tpu_custom_call.1} parent=51 // pred_check_branch
          %376 = sbr.rel (%p374) target = $region64
        $region63: #{tpu_custom_call.1} parent=51 // pred_region
          %377 = dma.done [#allocation6], 512
        $region64: #{tpu_custom_call.1} parent=51 // pred_fallthru
          _
        // Predicated region
        $region65: #{tpu_custom_call.1} parent=51 // pred_check
          %p378 = pneg %p113
        $region66: #{tpu_custom_call.1} parent=51 // pred_check_branch
          %380 = sbr.rel (%p378) target = $region68
        $region67: #{tpu_custom_call.1} parent=51 // pred_region
          %381 = dma.done [#allocation9], 6144
        $region68: #{tpu_custom_call.1} parent=51 // pred_fallthru
          _
        // Predicated region
        $region69: #{tpu_custom_call.1} parent=51 // pred_check
          %p382 = pneg %p134
        $region70: #{tpu_custom_call.1} parent=51 // pred_check_branch
          %384 = sbr.rel (%p382) target = $region72
        $region71: #{tpu_custom_call.1} parent=51 // pred_region
          %385 = dma.done [#allocation9], 512
        $region72: #{tpu_custom_call.1} parent=51 // pred_fallthru
          _
        // Predicated region
        $region73: #{tpu_custom_call.1} parent=51 // pred_check
          %p386 = pneg %p155
        $region74: #{tpu_custom_call.1} parent=51 // pred_check_branch
          %388 = sbr.rel (%p386) target = $region76
        $region75: #{tpu_custom_call.1} parent=51 // pred_region
          %389 = dma.done [#allocation12], 6144
        $region76: #{tpu_custom_call.1} parent=51 // pred_fallthru
          _
        // Predicated region
        $region77: #{tpu_custom_call.1} parent=51 // pred_check
          %p390 = pneg %p176
        $region78: #{tpu_custom_call.1} parent=51 // pred_check_branch
          %392 = sbr.rel (%p390) target = $region80
        $region79: #{tpu_custom_call.1} parent=51 // pred_region
          %393 = dma.done [#allocation12], 9216
        $region80: #{tpu_custom_call.1} parent=51 // pred_fallthru
          _
        // Predicated region
        $region81: #{tpu_custom_call.1} parent=51 // pred_check
          %p394 = pneg %p197
        $region82: #{tpu_custom_call.1} parent=51 // pred_check_branch
          %396 = sbr.rel (%p394) target = $region84
        $region83: #{tpu_custom_call.1} parent=51 // pred_region
          %397 = dma.done [#allocation15], 256
        $region84: #{tpu_custom_call.1} parent=51 // pred_fallthru
          _
        %s398 = sand.u32 %s37, 1
        %s399 = scalar_lea.sflag [#allocation3], %s398
        %s400 = sand.u32 %s37, 1
        %s401 = smul.addr %s400, 16
        %s402 = scalar_lea.vmem [#allocation2], %s401
        %p403 = pneg %p50
        %p404 = pneg %p47
        %p405 = pneg %p71
        %p406 = pneg %p68
        %p407 = pneg %p92
        %p408 = pneg %p89
        %p409 = pneg %p113
        %p410 = pneg %p110
        %p411 = pneg %p134
        %p412 = pneg %p131
        %p413 = pneg %p155
        %p414 = pneg %p152
        %p415 = pneg %p176
        %p416 = pneg %p173
        %p417 = pneg %p197
        %p418 = pneg %p194
        %p419 = pneg %p223
        %p420 = pneg %p220
        %s421 = sand.u32 %s210, 1
        %s422 = scalar_lea.sflag [#allocation4], %s421
        %s423 = sand.u32 %s210, 1
        %s424 = smul.addr %s423, 16
        %s425 = scalar_lea.vmem [#allocation16], %s424
        %v426 = vld [vmem:[%s365] sm:$0xff]
        %v427 = vld [vmem:[%s365 + $0x8] sm:$0xff]
        %v428 = vld [vmem:[#allocation7] sm:$0xff]
        %v429 = vld [vmem:[#allocation7 + $0x8] sm:$0xff]
        %s430 = scalar_lea.vmem [#allocation7], 16
        %v431 = vld [vmem:[%s430] sm:$0xff]
        %v432 = vld [vmem:[%s430 + $0x8] sm:$0xff]
        %v433 = vld [vmem:[#allocation5] sm:$0xff]
        %v434 = vld [vmem:[#allocation5 + $0x8] sm:$0xff]
        %v435 = vld [vmem:[#allocation5 + $0x10] sm:$0xff]
        %v436 = vld [vmem:[#allocation5 + $0x18] sm:$0xff]
        %v437 = vld [vmem:[#allocation5 + $0x20] sm:$0xff]
        %v438 = vld [vmem:[#allocation5 + $0x28] sm:$0xff]
        %v439 = vld [vmem:[#allocation5 + $0x30] sm:$0xff]
        %v440 = vld [vmem:[#allocation5 + $0x38] sm:$0xff]
        %vm441 = vcmask 523264
        %v443 = vsel %vm441, %v426, 0
        %v446 = vsel %vm441, %v427, 0
        %448 = vmatprep.subr.mxu0 0.0
        %449 = vmatpush1.msra.mxu0 0.0
        %450 = vmatprep.subr.mxu0 0.0
        %451 = vmatpush1.msra.mxu0 0.0
        %452 = vmatprep.subr.mxu0 0.0
        %453 = vmatpush1.msra.mxu0 0.0
        %454 = vmatprep.subr.mxu0 0.0
        %455 = vmatpush1.msra.mxu0 0.0
        %456 = vmatprep.subr.mxu0 0.0
        %457 = vmatpush1.msra.mxu0 0.0
        %458 = vmatprep.subr.mxu0 0.0
        %459 = vmatpush1.msra.mxu0 0.0
        %460 = vmatprep.subr.mxu0 0.0
        %461 = vmatpush1.msra.mxu0 0.0
        %462 = vmatprep.subr.mxu0 0.0
        %463 = vmatpush1.msra.mxu0 0.0
        %464 = vmatprep.subr.mxu0 0.0
        %465 = vmatpush1.msra.mxu0 %v440
        %466 = vmatprep.subr.mxu0 0.0
        %467 = vmatpush1.msra.mxu0 %v439
        %468 = vmatprep.subr.mxu0 0.0
        %469 = vmatpush1.msra.mxu0 %v438
        %470 = vmatprep.subr.mxu0 0.0
        %471 = vmatpush1.msra.mxu0 %v437
        %472 = vmatprep.subr.mxu0 0.0
        %473 = vmatpush1.msra.mxu0 %v436
        %474 = vmatprep.subr.mxu0 0.0
        %475 = vmatpush1.msra.mxu0 %v435
        %476 = vmatprep.subr.mxu0 0.0
        %477 = vmatpush1.msra.mxu0 %v434
        %478 = vmatprep.subr.mxu0 0.0
        %479 = vmatpush1.msra.mxu0 %v433
        %480 = vmatprep.subr.mxu0 0.0
        %481 = vmatpush2.msra.mxu0 0.0
        %482 = vmatprep.subr.mxu0 0.0
        %483 = vmatpush2.msra.mxu0 0.0
        %484 = vmatprep.subr.mxu0 0.0
        %485 = vmatpush2.msra.mxu0 0.0
        %486 = vmatprep.subr.mxu0 0.0
        %487 = vmatpush2.msra.mxu0 0.0
        %488 = vmatprep.subr.mxu0 0.0
        %489 = vmatpush2.msra.mxu0 0.0
        %490 = vmatprep.subr.mxu0 0.0
        %491 = vmatpush2.msra.mxu0 0.0
        %492 = vmatprep.subr.mxu0 0.0
        %493 = vmatpush2.msra.mxu0 0.0
        %494 = vmatprep.subr.mxu0 0.0
        %495 = vmatpush2.msra.mxu0 0.0
        %496 = vmatprep.subr.mxu0 0.0
        %497 = vmatpush2.msra.mxu0 0.0
        %498 = vmatprep.subr.mxu0 0.0
        %499 = vmatpush2.msra.mxu0 0.0
        %500 = vmatprep.subr.mxu0 0.0
        %501 = vmatpush2.msra.mxu0 0.0
        %502 = vmatprep.subr.mxu0 0.0
        %503 = vmatpush2.msra.mxu0 0.0
        %504 = vmatprep.subr.mxu0 0.0
        %505 = vmatpush2.msra.mxu0 0.0
        %506 = vmatprep.subr.mxu0 0.0
        %507 = vmatpush2.msra.mxu0 0.0
        %508 = vmatprep.subr.mxu0 0.0
        %509 = vmatpush2.msra.mxu0 0.0
        %510 = vmatprep.subr.mxu0 0.0
        %511 = vmatpush2.msra.mxu0 0.0
        %512 = vmatprep.mubr.f32.mxu0 0.0
        %513 = vmatmul.mubr.f32.gmra.mxu0 %v443
        %v514 = vpop.f32.mrf.mxu0
        %v515 = vadd.f32 0.0, %v514
        %v516 = vpop.f32.mrf.mxu0
        %517 = vmatprep.mubr.f32.mxu0 0.0
        %518 = vmatmul.mubr.f32.gmra.mxu0 %v446
        %v519 = vpop.f32.mrf.mxu0
        %v520 = vadd.f32 0.0, %v519
        %v521 = vpop.f32.mrf.mxu0
        %522 = vdwg.mxu0
        %v523 = vsub.f32 %v426, %v515
        %v524 = vsub.f32 %v427, %v520
        %v525 = vmul.f32 %v523, %v523
        %v526 = vmul.f32 %v524, %v524
        %v528 = vsel %vm441, %v525, 0
        %v531 = vsel %vm441, %v526, 0
        %533 = vmatprep.subr.mxu0 0.0
        %534 = vmatpush1.msra.mxu0 0.0
        %535 = vmatprep.subr.mxu0 0.0
        %536 = vmatpush1.msra.mxu0 0.0
        %537 = vmatprep.subr.mxu0 0.0
        %538 = vmatpush1.msra.mxu0 0.0
        %539 = vmatprep.subr.mxu0 0.0
        %540 = vmatpush1.msra.mxu0 0.0
        %541 = vmatprep.subr.mxu0 0.0
        %542 = vmatpush1.msra.mxu0 0.0
        %543 = vmatprep.subr.mxu0 0.0
        %544 = vmatpush1.msra.mxu0 0.0
        %545 = vmatprep.subr.mxu0 0.0
        %546 = vmatpush1.msra.mxu0 0.0
        %547 = vmatprep.subr.mxu0 0.0
        %548 = vmatpush1.msra.mxu0 0.0
        %549 = vmatprep.subr.mxu0 0.0
        %550 = vmatpush1.msra.mxu0 %v440
        %551 = vmatprep.subr.mxu0 0.0
        %552 = vmatpush1.msra.mxu0 %v439
        %553 = vmatprep.subr.mxu0 0.0
        %554 = vmatpush1.msra.mxu0 %v438
        %555 = vmatprep.subr.mxu0 0.0
        %556 = vmatpush1.msra.mxu0 %v437
        %557 = vmatprep.subr.mxu0 0.0
        %558 = vmatpush1.msra.mxu0 %v436
        %559 = vmatprep.subr.mxu0 0.0
        %560 = vmatpush1.msra.mxu0 %v435
        %561 = vmatprep.subr.mxu0 0.0
        %562 = vmatpush1.msra.mxu0 %v434
        %563 = vmatprep.subr.mxu0 0.0
        %564 = vmatpush1.msra.mxu0 %v433
        %565 = vmatprep.subr.mxu0 0.0
        %566 = vmatpush2.msra.mxu0 0.0
        %567 = vmatprep.subr.mxu0 0.0
        %568 = vmatpush2.msra.mxu0 0.0
        %569 = vmatprep.subr.mxu0 0.0
        %570 = vmatpush2.msra.mxu0 0.0
        %571 = vmatprep.subr.mxu0 0.0
        %572 = vmatpush2.msra.mxu0 0.0
        %573 = vmatprep.subr.mxu0 0.0
        %574 = vmatpush2.msra.mxu0 0.0
        %575 = vmatprep.subr.mxu0 0.0
        %576 = vmatpush2.msra.mxu0 0.0
        %577 = vmatprep.subr.mxu0 0.0
        %578 = vmatpush2.msra.mxu0 0.0
        %579 = vmatprep.subr.mxu0 0.0
        %580 = vmatpush2.msra.mxu0 0.0
        %581 = vmatprep.subr.mxu0 0.0
        %582 = vmatpush2.msra.mxu0 0.0
        %583 = vmatprep.subr.mxu0 0.0
        %584 = vmatpush2.msra.mxu0 0.0
        %585 = vmatprep.subr.mxu0 0.0
        %586 = vmatpush2.msra.mxu0 0.0
        %587 = vmatprep.subr.mxu0 0.0
        %588 = vmatpush2.msra.mxu0 0.0
        %589 = vmatprep.subr.mxu0 0.0
        %590 = vmatpush2.msra.mxu0 0.0
        %591 = vmatprep.subr.mxu0 0.0
        %592 = vmatpush2.msra.mxu0 0.0
        %593 = vmatprep.subr.mxu0 0.0
        %594 = vmatpush2.msra.mxu0 0.0
        %595 = vmatprep.subr.mxu0 0.0
        %596 = vmatpush2.msra.mxu0 0.0
        %597 = vmatprep.mubr.f32.mxu0 0.0
        %598 = vmatmul.mubr.f32.gmra.mxu0 %v528
        %v599 = vpop.f32.mrf.mxu0
        %v600 = vadd.f32 1e-06, %v599
        %v601 = vpop.f32.mrf.mxu0
        %602 = vmatprep.mubr.f32.mxu0 0.0
        %603 = vmatmul.mubr.f32.gmra.mxu0 %v531
        %v604 = vpop.f32.mrf.mxu0
        %v605 = vadd.f32 1e-06, %v604
        %v606 = vpop.f32.mrf.mxu0
        %607 = vdwg.mxu0
        %v608 = vrsqrt.pop %v600
        %v609 = vrsqrt.pop %v605
        %v610 = vmul.f32 %v523, %v608
        %v611 = vmul.f32 %v524, %v609
        %vm612 = vcmask 130048
        %v614 = vsel %vm612, %v428, 0
        %v617 = vsel %vm612, %v429, 0
        %619 = vmatprep.subr.mxu0 0.0
        %620 = vmatpush1.msra.mxu0 0.0
        %621 = vmatprep.subr.mxu0 0.0
        %622 = vmatpush1.msra.mxu0 0.0
        %623 = vmatprep.subr.mxu0 0.0
        %624 = vmatpush1.msra.mxu0 0.0
        %625 = vmatprep.subr.mxu0 0.0
        %626 = vmatpush1.msra.mxu0 0.0
        %627 = vmatprep.subr.mxu0 0.0
        %628 = vmatpush1.msra.mxu0 0.0
        %629 = vmatprep.subr.mxu0 0.0
        %630 = vmatpush1.msra.mxu0 0.0
        %631 = vmatprep.subr.mxu0 0.0
        %632 = vmatpush1.msra.mxu0 0.0
        %633 = vmatprep.subr.mxu0 0.0
        %634 = vmatpush1.msra.mxu0 0.0
        %635 = vmatprep.subr.mxu0 0.0
        %636 = vmatpush1.msra.mxu0 0.0
        %637 = vmatprep.subr.mxu0 0.0
        %638 = vmatpush1.msra.mxu0 0.0
        %639 = vmatprep.subr.mxu0 0.0
        %640 = vmatpush1.msra.mxu0 0.0
        %641 = vmatprep.subr.mxu0 0.0
        %642 = vmatpush1.msra.mxu0 0.0
        %643 = vmatprep.subr.mxu0 0.0
        %644 = vmatpush1.msra.mxu0 0.0
        %645 = vmatprep.subr.mxu0 0.0
        %646 = vmatpush1.msra.mxu0 0.0
        %647 = vmatprep.subr.mxu0 0.0
        %648 = vmatpush1.msra.mxu0 %v611
        %649 = vmatprep.subr.mxu0 0.0
        %650 = vmatpush1.msra.mxu0 %v610
        %651 = vmatprep.subr.mxu0 0.0
        %652 = vmatpush2.msra.mxu0 0.0
        %653 = vmatprep.subr.mxu0 0.0
        %654 = vmatpush2.msra.mxu0 0.0
        %655 = vmatprep.subr.mxu0 0.0
        %656 = vmatpush2.msra.mxu0 0.0
        %657 = vmatprep.subr.mxu0 0.0
        %658 = vmatpush2.msra.mxu0 0.0
        %659 = vmatprep.subr.mxu0 0.0
        %660 = vmatpush2.msra.mxu0 0.0
        %661 = vmatprep.subr.mxu0 0.0
        %662 = vmatpush2.msra.mxu0 0.0
        %663 = vmatprep.subr.mxu0 0.0
        %664 = vmatpush2.msra.mxu0 0.0
        %665 = vmatprep.subr.mxu0 0.0
        %666 = vmatpush2.msra.mxu0 0.0
        %667 = vmatprep.subr.mxu0 0.0
        %668 = vmatpush2.msra.mxu0 0.0
        %669 = vmatprep.subr.mxu0 0.0
        %670 = vmatpush2.msra.mxu0 0.0
        %671 = vmatprep.subr.mxu0 0.0
        %672 = vmatpush2.msra.mxu0 0.0
        %673 = vmatprep.subr.mxu0 0.0
        %674 = vmatpush2.msra.mxu0 0.0
        %675 = vmatprep.subr.mxu0 0.0
        %676 = vmatpush2.msra.mxu0 0.0
        %677 = vmatprep.subr.mxu0 0.0
        %678 = vmatpush2.msra.mxu0 0.0
        %679 = vmatprep.subr.mxu0 0.0
        %680 = vmatpush2.msra.mxu0 0.0
        %681 = vmatprep.subr.mxu0 0.0
        %682 = vmatpush2.msra.mxu0 0.0
        %683 = vmatprep.mubr.f32.mxu0 0.0
        %684 = vmatmul.mubr.f32.gmra.mxu0 %v614
        %v685 = vpop.f32.mrf.mxu0
        %v686 = vadd.f32 0.0, %v685
        %v687 = vpop.f32.mrf.mxu0
        %688 = vmatprep.mubr.f32.mxu0 0.0
        %689 = vmatmul.mubr.f32.gmra.mxu0 %v617
        %v690 = vpop.f32.mrf.mxu0
        %v691 = vadd.f32 0.0, %v690
        %v692 = vpop.f32.mrf.mxu0
        %693 = vdwg.mxu0
        %v695 = vsel %vm612, %v431, 0
        %v698 = vsel %vm612, %v432, 0
        %700 = vmatprep.subr.mxu0 0.0
        %701 = vmatpush1.msra.mxu0 0.0
        %702 = vmatprep.subr.mxu0 0.0
        %703 = vmatpush1.msra.mxu0 0.0
        %704 = vmatprep.subr.mxu0 0.0
        %705 = vmatpush1.msra.mxu0 0.0
        %706 = vmatprep.subr.mxu0 0.0
        %707 = vmatpush1.msra.mxu0 0.0
        %708 = vmatprep.subr.mxu0 0.0
        %709 = vmatpush1.msra.mxu0 0.0
        %710 = vmatprep.subr.mxu0 0.0
        %711 = vmatpush1.msra.mxu0 0.0
        %712 = vmatprep.subr.mxu0 0.0
        %713 = vmatpush1.msra.mxu0 0.0
        %714 = vmatprep.subr.mxu0 0.0
        %715 = vmatpush1.msra.mxu0 0.0
        %716 = vmatprep.subr.mxu0 0.0
        %717 = vmatpush1.msra.mxu0 0.0
        %718 = vmatprep.subr.mxu0 0.0
        %719 = vmatpush1.msra.mxu0 0.0
        %720 = vmatprep.subr.mxu0 0.0
        %721 = vmatpush1.msra.mxu0 0.0
        %722 = vmatprep.subr.mxu0 0.0
        %723 = vmatpush1.msra.mxu0 0.0
        %724 = vmatprep.subr.mxu0 0.0
        %725 = vmatpush1.msra.mxu0 0.0
        %726 = vmatprep.subr.mxu0 0.0
        %727 = vmatpush1.msra.mxu0 0.0
        %728 = vmatprep.subr.mxu0 0.0
        %729 = vmatpush1.msra.mxu0 %v611
        %730 = vmatprep.subr.mxu0 0.0
        %731 = vmatpush1.msra.mxu0 %v610
        %732 = vmatprep.subr.mxu0 0.0
        %733 = vmatpush2.msra.mxu0 0.0
        %734 = vmatprep.subr.mxu0 0.0
        %735 = vmatpush2.msra.mxu0 0.0
        %736 = vmatprep.subr.mxu0 0.0
        %737 = vmatpush2.msra.mxu0 0.0
        %738 = vmatprep.subr.mxu0 0.0
        %739 = vmatpush2.msra.mxu0 0.0
        %740 = vmatprep.subr.mxu0 0.0
        %741 = vmatpush2.msra.mxu0 0.0
        %742 = vmatprep.subr.mxu0 0.0
        %743 = vmatpush2.msra.mxu0 0.0
        %744 = vmatprep.subr.mxu0 0.0
        %745 = vmatpush2.msra.mxu0 0.0
        %746 = vmatprep.subr.mxu0 0.0
        %747 = vmatpush2.msra.mxu0 0.0
        %748 = vmatprep.subr.mxu0 0.0
        %749 = vmatpush2.msra.mxu0 0.0
        %750 = vmatprep.subr.mxu0 0.0
        %751 = vmatpush2.msra.mxu0 0.0
        %752 = vmatprep.subr.mxu0 0.0
        %753 = vmatpush2.msra.mxu0 0.0
        %754 = vmatprep.subr.mxu0 0.0
        %755 = vmatpush2.msra.mxu0 0.0
        %756 = vmatprep.subr.mxu0 0.0
        %757 = vmatpush2.msra.mxu0 0.0
        %758 = vmatprep.subr.mxu0 0.0
        %759 = vmatpush2.msra.mxu0 0.0
        %760 = vmatprep.subr.mxu0 0.0
        %761 = vmatpush2.msra.mxu0 0.0
        %762 = vmatprep.subr.mxu0 0.0
        %763 = vmatpush2.msra.mxu0 0.0
        %764 = vmatprep.mubr.f32.mxu0 0.0
        %765 = vmatmul.mubr.f32.gmra.mxu0 %v695
        %v766 = vpop.f32.mrf.mxu0
        %v767 = vadd.f32 0.0, %v766
        %v768 = vpop.f32.mrf.mxu0
        %769 = vmatprep.mubr.f32.mxu0 0.0
        %770 = vmatmul.mubr.f32.gmra.mxu0 %v698
        %v771 = vpop.f32.mrf.mxu0
        %v772 = vadd.f32 0.0, %v771
        %v773 = vpop.f32.mrf.mxu0
        %774 = vdwg.mxu0
        %v775 = vld [vmem:[#allocation10] sm:$0xff]
        %v776 = vld [vmem:[#allocation10 + $0x8] sm:$0xff]
        %v777 = vld [vmem:[#allocation10 + $0x10] sm:$0xff]
        %v778 = vld [vmem:[#allocation10 + $0x18] sm:$0xff]
        %v779 = vld [vmem:[#allocation8] sm:$0xff]
        %v780 = vld [vmem:[#allocation8 + $0x8] sm:$0xff]
        %v781 = vld [vmem:[#allocation8 + $0x10] sm:$0xff]
        %v782 = vld [vmem:[#allocation8 + $0x18] sm:$0xff]
        %v783 = vld [vmem:[#allocation8 + $0x20] sm:$0xff]
        %v784 = vld [vmem:[#allocation8 + $0x28] sm:$0xff]
        %v785 = vld [vmem:[#allocation8 + $0x30] sm:$0xff]
        %v786 = vld [vmem:[#allocation8 + $0x38] sm:$0xff]
        %v787 = vld [vmem:[#allocation8 + $0x40] sm:$0xff]
        %v788 = vld [vmem:[#allocation8 + $0x48] sm:$0xff]
        %v789 = vld [vmem:[#allocation8 + $0x50] sm:$0xff]
        %v790 = vld [vmem:[#allocation8 + $0x58] sm:$0xff]
        %v791 = vld [vmem:[#allocation8 + $0x60] sm:$0xff]
        %v792 = vld [vmem:[#allocation8 + $0x68] sm:$0xff]
        %v793 = vld [vmem:[#allocation8 + $0x70] sm:$0xff]
        %v794 = vld [vmem:[#allocation8 + $0x78] sm:$0xff]
        %v796 = vsel %vm441, %v686, 0
        %v799 = vsel %vm441, %v691, 0
        %801 = vmatprep.subr.mxu0 0.0
        %802 = vmatpush1.msra.mxu0 0.0
        %803 = vmatprep.subr.mxu0 0.0
        %804 = vmatpush1.msra.mxu0 0.0
        %805 = vmatprep.subr.mxu0 0.0
        %806 = vmatpush1.msra.mxu0 0.0
        %807 = vmatprep.subr.mxu0 0.0
        %808 = vmatpush1.msra.mxu0 0.0
        %809 = vmatprep.subr.mxu0 0.0
        %810 = vmatpush1.msra.mxu0 0.0
        %811 = vmatprep.subr.mxu0 0.0
        %812 = vmatpush1.msra.mxu0 0.0
        %813 = vmatprep.subr.mxu0 0.0
        %814 = vmatpush1.msra.mxu0 0.0
        %815 = vmatprep.subr.mxu0 0.0
        %816 = vmatpush1.msra.mxu0 0.0
        %817 = vmatprep.subr.mxu0 %v794
        %818 = vmatpush1.msra.mxu0 %v793
        %819 = vmatprep.subr.mxu0 %v792
        %820 = vmatpush1.msra.mxu0 %v791
        %821 = vmatprep.subr.mxu0 %v790
        %822 = vmatpush1.msra.mxu0 %v789
        %823 = vmatprep.subr.mxu0 %v788
        %824 = vmatpush1.msra.mxu0 %v787
        %825 = vmatprep.subr.mxu0 %v786
        %826 = vmatpush1.msra.mxu0 %v785
        %827 = vmatprep.subr.mxu0 %v784
        %828 = vmatpush1.msra.mxu0 %v783
        %829 = vmatprep.subr.mxu0 %v782
        %830 = vmatpush1.msra.mxu0 %v781
        %831 = vmatprep.subr.mxu0 %v780
        %832 = vmatpush1.msra.mxu0 %v779
        %833 = vmatprep.subr.mxu0 0.0
        %834 = vmatpush2.msra.mxu0 0.0
        %835 = vmatprep.subr.mxu0 0.0
        %836 = vmatpush2.msra.mxu0 0.0
        %837 = vmatprep.subr.mxu0 0.0
        %838 = vmatpush2.msra.mxu0 0.0
        %839 = vmatprep.subr.mxu0 0.0
        %840 = vmatpush2.msra.mxu0 0.0
        %841 = vmatprep.subr.mxu0 0.0
        %842 = vmatpush2.msra.mxu0 0.0
        %843 = vmatprep.subr.mxu0 0.0
        %844 = vmatpush2.msra.mxu0 0.0
        %845 = vmatprep.subr.mxu0 0.0
        %846 = vmatpush2.msra.mxu0 0.0
        %847 = vmatprep.subr.mxu0 0.0
        %848 = vmatpush2.msra.mxu0 0.0
        %849 = vmatprep.subr.mxu0 0.0
        %850 = vmatpush2.msra.mxu0 0.0
        %851 = vmatprep.subr.mxu0 0.0
        %852 = vmatpush2.msra.mxu0 0.0
        %853 = vmatprep.subr.mxu0 0.0
        %854 = vmatpush2.msra.mxu0 0.0
        %855 = vmatprep.subr.mxu0 0.0
        %856 = vmatpush2.msra.mxu0 0.0
        %857 = vmatprep.subr.mxu0 0.0
        %858 = vmatpush2.msra.mxu0 0.0
        %859 = vmatprep.subr.mxu0 0.0
        %860 = vmatpush2.msra.mxu0 0.0
        %861 = vmatprep.subr.mxu0 0.0
        %862 = vmatpush2.msra.mxu0 0.0
        %863 = vmatprep.subr.mxu0 0.0
        %864 = vmatpush2.msra.mxu0 0.0
        %865 = vmatprep.mubr.f32.mxu0 0.0
        %866 = vmatmul.mubr.f32.gmra.mxu0 %v796
        %v867 = vpop.f32.mrf.mxu0
        %v868 = vadd.f32 0.0, %v867
        %v869 = vpop.f32.mrf.mxu0
        %v870 = vadd.f32 0.0, %v869
        %871 = vmatprep.mubr.f32.mxu0 0.0
        %872 = vmatmul.mubr.f32.gmra.mxu0 %v799
        %v873 = vpop.f32.mrf.mxu0
        %v874 = vadd.f32 0.0, %v873
        %v875 = vpop.f32.mrf.mxu0
        %v876 = vadd.f32 0.0, %v875
        %877 = vdwg.mxu0
        %v878 = vadd.f32 %v775, %v868
        %v879 = vadd.f32 %v776, %v870
        %v880 = vadd.f32 %v777, %v874
        %v881 = vadd.f32 %v778, %v876
        %s882 = scalar_lea.vmem [#allocation8], 128
        %v883 = vld [vmem:[%s882] sm:$0xff]
        %v884 = vld [vmem:[%s882 + $0x8] sm:$0xff]
        %v885 = vld [vmem:[%s882 + $0x10] sm:$0xff]
        %v886 = vld [vmem:[%s882 + $0x18] sm:$0xff]
        %v887 = vld [vmem:[%s882 + $0x20] sm:$0xff]
        %v888 = vld [vmem:[%s882 + $0x28] sm:$0xff]
        %v889 = vld [vmem:[%s882 + $0x30] sm:$0xff]
        %v890 = vld [vmem:[%s882 + $0x38] sm:$0xff]
        %v891 = vld [vmem:[%s882 + $0x40] sm:$0xff]
        %v892 = vld [vmem:[%s882 + $0x48] sm:$0xff]
        %v893 = vld [vmem:[%s882 + $0x50] sm:$0xff]
        %v894 = vld [vmem:[%s882 + $0x58] sm:$0xff]
        %v895 = vld [vmem:[%s882 + $0x60] sm:$0xff]
        %v896 = vld [vmem:[%s882 + $0x68] sm:$0xff]
        %v897 = vld [vmem:[%s882 + $0x70] sm:$0xff]
        %v898 = vld [vmem:[%s882 + $0x78] sm:$0xff]
        %v900 = vsel %vm441, %v610, 0
        %v903 = vsel %vm441, %v611, 0
        %905 = vmatprep.subr.mxu0 0.0
        %906 = vmatpush1.msra.mxu0 0.0
        %907 = vmatprep.subr.mxu0 0.0
        %908 = vmatpush1.msra.mxu0 0.0
        %909 = vmatprep.subr.mxu0 0.0
        %910 = vmatpush1.msra.mxu0 0.0
        %911 = vmatprep.subr.mxu0 0.0
        %912 = vmatpush1.msra.mxu0 0.0
        %913 = vmatprep.subr.mxu0 0.0
        %914 = vmatpush1.msra.mxu0 0.0
        %915 = vmatprep.subr.mxu0 0.0
        %916 = vmatpush1.msra.mxu0 0.0
        %917 = vmatprep.subr.mxu0 0.0
        %918 = vmatpush1.msra.mxu0 0.0
        %919 = vmatprep.subr.mxu0 0.0
        %920 = vmatpush1.msra.mxu0 0.0
        %921 = vmatprep.subr.mxu0 %v898
        %922 = vmatpush1.msra.mxu0 %v897
        %923 = vmatprep.subr.mxu0 %v896
        %924 = vmatpush1.msra.mxu0 %v895
        %925 = vmatprep.subr.mxu0 %v894
        %926 = vmatpush1.msra.mxu0 %v893
        %927 = vmatprep.subr.mxu0 %v892
        %928 = vmatpush1.msra.mxu0 %v891
        %929 = vmatprep.subr.mxu0 %v890
        %930 = vmatpush1.msra.mxu0 %v889
        %931 = vmatprep.subr.mxu0 %v888
        %932 = vmatpush1.msra.mxu0 %v887
        %933 = vmatprep.subr.mxu0 %v886
        %934 = vmatpush1.msra.mxu0 %v885
        %935 = vmatprep.subr.mxu0 %v884
        %936 = vmatpush1.msra.mxu0 %v883
        %937 = vmatprep.subr.mxu0 0.0
        %938 = vmatpush2.msra.mxu0 0.0
        %939 = vmatprep.subr.mxu0 0.0
        %940 = vmatpush2.msra.mxu0 0.0
        %941 = vmatprep.subr.mxu0 0.0
        %942 = vmatpush2.msra.mxu0 0.0
        %943 = vmatprep.subr.mxu0 0.0
        %944 = vmatpush2.msra.mxu0 0.0
        %945 = vmatprep.subr.mxu0 0.0
        %946 = vmatpush2.msra.mxu0 0.0
        %947 = vmatprep.subr.mxu0 0.0
        %948 = vmatpush2.msra.mxu0 0.0
        %949 = vmatprep.subr.mxu0 0.0
        %950 = vmatpush2.msra.mxu0 0.0
        %951 = vmatprep.subr.mxu0 0.0
        %952 = vmatpush2.msra.mxu0 0.0
        %953 = vmatprep.subr.mxu0 0.0
        %954 = vmatpush2.msra.mxu0 0.0
        %955 = vmatprep.subr.mxu0 0.0
        %956 = vmatpush2.msra.mxu0 0.0
        %957 = vmatprep.subr.mxu0 0.0
        %958 = vmatpush2.msra.mxu0 0.0
        %959 = vmatprep.subr.mxu0 0.0
        %960 = vmatpush2.msra.mxu0 0.0
        %961 = vmatprep.subr.mxu0 0.0
        %962 = vmatpush2.msra.mxu0 0.0
        %963 = vmatprep.subr.mxu0 0.0
        %964 = vmatpush2.msra.mxu0 0.0
        %965 = vmatprep.subr.mxu0 0.0
        %966 = vmatpush2.msra.mxu0 0.0
        %967 = vmatprep.subr.mxu0 0.0
        %968 = vmatpush2.msra.mxu0 0.0
        %969 = vmatprep.mubr.f32.mxu0 0.0
        %970 = vmatmul.mubr.f32.gmra.mxu0 %v900
        %v971 = vpop.f32.mrf.mxu0
        %v972 = vadd.f32 0.0, %v971
        %v973 = vpop.f32.mrf.mxu0
        %v974 = vadd.f32 0.0, %v973
        %975 = vmatprep.mubr.f32.mxu0 0.0
        %976 = vmatmul.mubr.f32.gmra.mxu0 %v903
        %v977 = vpop.f32.mrf.mxu0
        %v978 = vadd.f32 0.0, %v977
        %v979 = vpop.f32.mrf.mxu0
        %v980 = vadd.f32 0.0, %v979
        %981 = vdwg.mxu0
        %v982 = vadd.f32 %v878, %v972
        %v983 = vadd.f32 %v879, %v974
        %v984 = vadd.f32 %v880, %v978
        %v985 = vadd.f32 %v881, %v980
        %s986 = scalar_lea.vmem [#allocation8], 256
        %v987 = vld [vmem:[%s986] sm:$0xff]
        %v988 = vld [vmem:[%s986 + $0x8] sm:$0xff]
        %v989 = vld [vmem:[%s986 + $0x10] sm:$0xff]
        %v990 = vld [vmem:[%s986 + $0x18] sm:$0xff]
        %v991 = vld [vmem:[%s986 + $0x20] sm:$0xff]
        %v992 = vld [vmem:[%s986 + $0x28] sm:$0xff]
        %v993 = vld [vmem:[%s986 + $0x30] sm:$0xff]
        %v994 = vld [vmem:[%s986 + $0x38] sm:$0xff]
        %v995 = vld [vmem:[%s986 + $0x40] sm:$0xff]
        %v996 = vld [vmem:[%s986 + $0x48] sm:$0xff]
        %v997 = vld [vmem:[%s986 + $0x50] sm:$0xff]
        %v998 = vld [vmem:[%s986 + $0x58] sm:$0xff]
        %v999 = vld [vmem:[%s986 + $0x60] sm:$0xff]
        %v1000 = vld [vmem:[%s986 + $0x68] sm:$0xff]
        %v1001 = vld [vmem:[%s986 + $0x70] sm:$0xff]
        %v1002 = vld [vmem:[%s986 + $0x78] sm:$0xff]
        %v1004 = vsel %vm441, %v767, 0
        %v1007 = vsel %vm441, %v772, 0
        %1009 = vmatprep.subr.mxu0 0.0
        %1010 = vmatpush1.msra.mxu0 0.0
        %1011 = vmatprep.subr.mxu0 0.0
        %1012 = vmatpush1.msra.mxu0 0.0
        %1013 = vmatprep.subr.mxu0 0.0
        %1014 = vmatpush1.msra.mxu0 0.0
        %1015 = vmatprep.subr.mxu0 0.0
        %1016 = vmatpush1.msra.mxu0 0.0
        %1017 = vmatprep.subr.mxu0 0.0
        %1018 = vmatpush1.msra.mxu0 0.0
        %1019 = vmatprep.subr.mxu0 0.0
        %1020 = vmatpush1.msra.mxu0 0.0
        %1021 = vmatprep.subr.mxu0 0.0
        %1022 = vmatpush1.msra.mxu0 0.0
        %1023 = vmatprep.subr.mxu0 0.0
        %1024 = vmatpush1.msra.mxu0 0.0
        %1025 = vmatprep.subr.mxu0 %v1002
        %1026 = vmatpush1.msra.mxu0 %v1001
        %1027 = vmatprep.subr.mxu0 %v1000
        %1028 = vmatpush1.msra.mxu0 %v999
        %1029 = vmatprep.subr.mxu0 %v998
        %1030 = vmatpush1.msra.mxu0 %v997
        %1031 = vmatprep.subr.mxu0 %v996
        %1032 = vmatpush1.msra.mxu0 %v995
        %1033 = vmatprep.subr.mxu0 %v994
        %1034 = vmatpush1.msra.mxu0 %v993
        %1035 = vmatprep.subr.mxu0 %v992
        %1036 = vmatpush1.msra.mxu0 %v991
        %1037 = vmatprep.subr.mxu0 %v990
        %1038 = vmatpush1.msra.mxu0 %v989
        %1039 = vmatprep.subr.mxu0 %v988
        %1040 = vmatpush1.msra.mxu0 %v987
        %1041 = vmatprep.subr.mxu0 0.0
        %1042 = vmatpush2.msra.mxu0 0.0
        %1043 = vmatprep.subr.mxu0 0.0
        %1044 = vmatpush2.msra.mxu0 0.0
        %1045 = vmatprep.subr.mxu0 0.0
        %1046 = vmatpush2.msra.mxu0 0.0
        %1047 = vmatprep.subr.mxu0 0.0
        %1048 = vmatpush2.msra.mxu0 0.0
        %1049 = vmatprep.subr.mxu0 0.0
        %1050 = vmatpush2.msra.mxu0 0.0
        %1051 = vmatprep.subr.mxu0 0.0
        %1052 = vmatpush2.msra.mxu0 0.0
        %1053 = vmatprep.subr.mxu0 0.0
        %1054 = vmatpush2.msra.mxu0 0.0
        %1055 = vmatprep.subr.mxu0 0.0
        %1056 = vmatpush2.msra.mxu0 0.0
        %1057 = vmatprep.subr.mxu0 0.0
        %1058 = vmatpush2.msra.mxu0 0.0
        %1059 = vmatprep.subr.mxu0 0.0
        %1060 = vmatpush2.msra.mxu0 0.0
        %1061 = vmatprep.subr.mxu0 0.0
        %1062 = vmatpush2.msra.mxu0 0.0
        %1063 = vmatprep.subr.mxu0 0.0
        %1064 = vmatpush2.msra.mxu0 0.0
        %1065 = vmatprep.subr.mxu0 0.0
        %1066 = vmatpush2.msra.mxu0 0.0
        %1067 = vmatprep.subr.mxu0 0.0
        %1068 = vmatpush2.msra.mxu0 0.0
        %1069 = vmatprep.subr.mxu0 0.0
        %1070 = vmatpush2.msra.mxu0 0.0
        %1071 = vmatprep.subr.mxu0 0.0
        %1072 = vmatpush2.msra.mxu0 0.0
        %1073 = vmatprep.mubr.f32.mxu0 0.0
        %1074 = vmatmul.mubr.f32.gmra.mxu0 %v1004
        %v1075 = vpop.f32.mrf.mxu0
        %v1076 = vadd.f32 0.0, %v1075
        %v1077 = vpop.f32.mrf.mxu0
        %v1078 = vadd.f32 0.0, %v1077
        %1079 = vmatprep.mubr.f32.mxu0 0.0
        %1080 = vmatmul.mubr.f32.gmra.mxu0 %v1007
        %v1081 = vpop.f32.mrf.mxu0
        %v1082 = vadd.f32 0.0, %v1081
        %v1083 = vpop.f32.mrf.mxu0
        %v1084 = vadd.f32 0.0, %v1083
        %1085 = vdwg.mxu0
        %v1086 = vadd.f32 %v982, %v1076
        %v1087 = vadd.f32 %v983, %v1078
        %v1088 = vadd.f32 %v984, %v1082
        %v1089 = vadd.f32 %v985, %v1084
        %v1090 = vld [vmem:[#allocation11] sm:$0xff]
        %v1091 = vld [vmem:[#allocation11 + $0x8] sm:$0xff]
        %v1092 = vld [vmem:[#allocation11 + $0x10] sm:$0xff]
        %v1093 = vld [vmem:[#allocation11 + $0x18] sm:$0xff]
        %v1094 = vld [vmem:[#allocation11 + $0x20] sm:$0xff]
        %v1095 = vld [vmem:[#allocation11 + $0x28] sm:$0xff]
        %v1096 = vld [vmem:[#allocation11 + $0x30] sm:$0xff]
        %v1097 = vld [vmem:[#allocation11 + $0x38] sm:$0xff]
        %v1098 = vld [vmem:[#allocation11 + $0x40] sm:$0xff]
        %v1099 = vld [vmem:[#allocation11 + $0x48] sm:$0xff]
        %v1100 = vld [vmem:[#allocation11 + $0x50] sm:$0xff]
        %v1101 = vld [vmem:[#allocation11 + $0x58] sm:$0xff]
        %v1102 = vld [vmem:[#allocation11 + $0x60] sm:$0xff]
        %v1103 = vld [vmem:[#allocation11 + $0x68] sm:$0xff]
        %v1104 = vld [vmem:[#allocation11 + $0x70] sm:$0xff]
        %v1105 = vld [vmem:[#allocation11 + $0x78] sm:$0xff]
        %v1106 = vld [vmem:[#allocation11 + $0x80] sm:$0xff]
        %v1107 = vld [vmem:[#allocation11 + $0x88] sm:$0xff]
        %v1108 = vld [vmem:[#allocation11 + $0x90] sm:$0xff]
        %v1109 = vld [vmem:[#allocation11 + $0x98] sm:$0xff]
        %v1110 = vld [vmem:[#allocation11 + $0xa0] sm:$0xff]
        %v1111 = vld [vmem:[#allocation11 + $0xa8] sm:$0xff]
        %v1112 = vld [vmem:[#allocation11 + $0xb0] sm:$0xff]
        %v1113 = vld [vmem:[#allocation11 + $0xb8] sm:$0xff]
        %v1114 = vld [vmem:[#allocation11 + $0xc0] sm:$0xff]
        %v1115 = vld [vmem:[#allocation11 + $0xc8] sm:$0xff]
        %v1116 = vld [vmem:[#allocation11 + $0xd0] sm:$0xff]
        %v1117 = vld [vmem:[#allocation11 + $0xd8] sm:$0xff]
        %v1118 = vld [vmem:[#allocation11 + $0xe0] sm:$0xff]
        %v1119 = vld [vmem:[#allocation11 + $0xe8] sm:$0xff]
        %v1120 = vld [vmem:[#allocation11 + $0xf0] sm:$0xff]
        %v1121 = vld [vmem:[#allocation11 + $0xf8] sm:$0xff]
        %v1122 = vld [vmem:[#allocation11 + $0x100] sm:$0xff]
        %v1123 = vld [vmem:[#allocation11 + $0x108] sm:$0xff]
        %v1124 = vld [vmem:[#allocation11 + $0x110] sm:$0xff]
        %v1125 = vld [vmem:[#allocation11 + $0x118] sm:$0xff]
        %v1126 = vld [vmem:[#allocation11 + $0x120] sm:$0xff]
        %v1127 = vld [vmem:[#allocation11 + $0x128] sm:$0xff]
        %v1128 = vld [vmem:[#allocation11 + $0x130] sm:$0xff]
        %v1129 = vld [vmem:[#allocation11 + $0x138] sm:$0xff]
        %v1130 = vld [vmem:[#allocation11 + $0x140] sm:$0xff]
        %v1131 = vld [vmem:[#allocation11 + $0x148] sm:$0xff]
        %v1132 = vld [vmem:[#allocation11 + $0x150] sm:$0xff]
        %v1133 = vld [vmem:[#allocation11 + $0x158] sm:$0xff]
        %v1134 = vld [vmem:[#allocation11 + $0x160] sm:$0xff]
        %v1135 = vld [vmem:[#allocation11 + $0x168] sm:$0xff]
        %v1136 = vld [vmem:[#allocation11 + $0x170] sm:$0xff]
        %v1137 = vld [vmem:[#allocation11 + $0x178] sm:$0xff]
        %v1139 = vsel %vm441, %v1087, 0
        %v1142 = vsel %vm441, %v1089, 0
        %1144 = vmatprep.subr.mxu0 %v1121
        %1145 = vmatpush1.msra.mxu0 %v1120
        %1146 = vmatprep.subr.mxu0 %v1119
        %1147 = vmatpush1.msra.mxu0 %v1118
        %1148 = vmatprep.subr.mxu0 %v1117
        %1149 = vmatpush1.msra.mxu0 %v1116
        %1150 = vmatprep.subr.mxu0 %v1115
        %1151 = vmatpush1.msra.mxu0 %v1114
        %1152 = vmatprep.subr.mxu0 %v1113
        %1153 = vmatpush1.msra.mxu0 %v1112
        %1154 = vmatprep.subr.mxu0 %v1111
        %1155 = vmatpush1.msra.mxu0 %v1110
        %1156 = vmatprep.subr.mxu0 %v1109
        %1157 = vmatpush1.msra.mxu0 %v1108
        %1158 = vmatprep.subr.mxu0 %v1107
        %1159 = vmatpush1.msra.mxu0 %v1106
        %1160 = vmatprep.subr.mxu0 %v1105
        %1161 = vmatpush1.msra.mxu0 %v1104
        %1162 = vmatprep.subr.mxu0 %v1103
        %1163 = vmatpush1.msra.mxu0 %v1102
        %1164 = vmatprep.subr.mxu0 %v1101
        %1165 = vmatpush1.msra.mxu0 %v1100
        %1166 = vmatprep.subr.mxu0 %v1099
        %1167 = vmatpush1.msra.mxu0 %v1098
        %1168 = vmatprep.subr.mxu0 %v1097
        %1169 = vmatpush1.msra.mxu0 %v1096
        %1170 = vmatprep.subr.mxu0 %v1095
        %1171 = vmatpush1.msra.mxu0 %v1094
        %1172 = vmatprep.subr.mxu0 %v1093
        %1173 = vmatpush1.msra.mxu0 %v1092
        %1174 = vmatprep.subr.mxu0 %v1091
        %1175 = vmatpush1.msra.mxu0 %v1090
        %1176 = vmatprep.subr.mxu0 0.0
        %1177 = vmatpush2.msra.mxu0 0.0
        %1178 = vmatprep.subr.mxu0 0.0
        %1179 = vmatpush2.msra.mxu0 0.0
        %1180 = vmatprep.subr.mxu0 0.0
        %1181 = vmatpush2.msra.mxu0 0.0
        %1182 = vmatprep.subr.mxu0 0.0
        %1183 = vmatpush2.msra.mxu0 0.0
        %1184 = vmatprep.subr.mxu0 0.0
        %1185 = vmatpush2.msra.mxu0 0.0
        %1186 = vmatprep.subr.mxu0 0.0
        %1187 = vmatpush2.msra.mxu0 0.0
        %1188 = vmatprep.subr.mxu0 0.0
        %1189 = vmatpush2.msra.mxu0 0.0
        %1190 = vmatprep.subr.mxu0 0.0
        %1191 = vmatpush2.msra.mxu0 0.0
        %1192 = vmatprep.subr.mxu0 %v1137
        %1193 = vmatpush2.msra.mxu0 %v1136
        %1194 = vmatprep.subr.mxu0 %v1135
        %1195 = vmatpush2.msra.mxu0 %v1134
        %1196 = vmatprep.subr.mxu0 %v1133
        %1197 = vmatpush2.msra.mxu0 %v1132
        %1198 = vmatprep.subr.mxu0 %v1131
        %1199 = vmatpush2.msra.mxu0 %v1130
        %1200 = vmatprep.subr.mxu0 %v1129
        %1201 = vmatpush2.msra.mxu0 %v1128
        %1202 = vmatprep.subr.mxu0 %v1127
        %1203 = vmatpush2.msra.mxu0 %v1126
        %1204 = vmatprep.subr.mxu0 %v1125
        %1205 = vmatpush2.msra.mxu0 %v1124
        %1206 = vmatprep.subr.mxu0 %v1123
        %1207 = vmatpush2.msra.mxu0 %v1122
        %1208 = vmatprep.mubr.f32.mxu0 %v1139
        %1209 = vmatmul.mubr.f32.gmra.mxu0 %v1086
        %v1210 = vpop.f32.mrf.mxu0
        %v1211 = vadd.f32 0.0, %v1210
        %v1212 = vpop.f32.mrf.mxu0
        %v1213 = vadd.f32 0.0, %v1212
        %1214 = vmatprep.mubr.f32.mxu0 %v1142
        %1215 = vmatmul.mubr.f32.gmra.mxu0 %v1088
        %v1216 = vpop.f32.mrf.mxu0
        %v1217 = vadd.f32 0.0, %v1216
        %v1218 = vpop.f32.mrf.mxu0
        %v1219 = vadd.f32 0.0, %v1218
        %1220 = vdwg.mxu0
        %v1221 = vsub.f32 %v1086, %v1211
        %v1222 = vsub.f32 %v1087, %v1213
        %v1223 = vsub.f32 %v1088, %v1217
        %v1224 = vsub.f32 %v1089, %v1219
        %v1225 = vmul.f32 %v1221, %v1221
        %v1226 = vmul.f32 %v1222, %v1222
        %v1227 = vmul.f32 %v1223, %v1223
        %v1228 = vmul.f32 %v1224, %v1224
        %v1230 = vsel %vm441, %v1226, 0
        %v1233 = vsel %vm441, %v1228, 0
        %1235 = vmatprep.subr.mxu0 %v1121
        %1236 = vmatpush1.msra.mxu0 %v1120
        %1237 = vmatprep.subr.mxu0 %v1119
        %1238 = vmatpush1.msra.mxu0 %v1118
        %1239 = vmatprep.subr.mxu0 %v1117
        %1240 = vmatpush1.msra.mxu0 %v1116
        %1241 = vmatprep.subr.mxu0 %v1115
        %1242 = vmatpush1.msra.mxu0 %v1114
        %1243 = vmatprep.subr.mxu0 %v1113
        %1244 = vmatpush1.msra.mxu0 %v1112
        %1245 = vmatprep.subr.mxu0 %v1111
        %1246 = vmatpush1.msra.mxu0 %v1110
        %1247 = vmatprep.subr.mxu0 %v1109
        %1248 = vmatpush1.msra.mxu0 %v1108
        %1249 = vmatprep.subr.mxu0 %v1107
        %1250 = vmatpush1.msra.mxu0 %v1106
        %1251 = vmatprep.subr.mxu0 %v1105
        %1252 = vmatpush1.msra.mxu0 %v1104
        %1253 = vmatprep.subr.mxu0 %v1103
        %1254 = vmatpush1.msra.mxu0 %v1102
        %1255 = vmatprep.subr.mxu0 %v1101
        %1256 = vmatpush1.msra.mxu0 %v1100
        %1257 = vmatprep.subr.mxu0 %v1099
        %1258 = vmatpush1.msra.mxu0 %v1098
        %1259 = vmatprep.subr.mxu0 %v1097
        %1260 = vmatpush1.msra.mxu0 %v1096
        %1261 = vmatprep.subr.mxu0 %v1095
        %1262 = vmatpush1.msra.mxu0 %v1094
        %1263 = vmatprep.subr.mxu0 %v1093
        %1264 = vmatpush1.msra.mxu0 %v1092
        %1265 = vmatprep.subr.mxu0 %v1091
        %1266 = vmatpush1.msra.mxu0 %v1090
        %1267 = vmatprep.subr.mxu0 0.0
        %1268 = vmatpush2.msra.mxu0 0.0
        %1269 = vmatprep.subr.mxu0 0.0
        %1270 = vmatpush2.msra.mxu0 0.0
        %1271 = vmatprep.subr.mxu0 0.0
        %1272 = vmatpush2.msra.mxu0 0.0
        %1273 = vmatprep.subr.mxu0 0.0
        %1274 = vmatpush2.msra.mxu0 0.0
        %1275 = vmatprep.subr.mxu0 0.0
        %1276 = vmatpush2.msra.mxu0 0.0
        %1277 = vmatprep.subr.mxu0 0.0
        %1278 = vmatpush2.msra.mxu0 0.0
        %1279 = vmatprep.subr.mxu0 0.0
        %1280 = vmatpush2.msra.mxu0 0.0
        %1281 = vmatprep.subr.mxu0 0.0
        %1282 = vmatpush2.msra.mxu0 0.0
        %1283 = vmatprep.subr.mxu0 %v1137
        %1284 = vmatpush2.msra.mxu0 %v1136
        %1285 = vmatprep.subr.mxu0 %v1135
        %1286 = vmatpush2.msra.mxu0 %v1134
        %1287 = vmatprep.subr.mxu0 %v1133
        %1288 = vmatpush2.msra.mxu0 %v1132
        %1289 = vmatprep.subr.mxu0 %v1131
        %1290 = vmatpush2.msra.mxu0 %v1130
        %1291 = vmatprep.subr.mxu0 %v1129
        %1292 = vmatpush2.msra.mxu0 %v1128
        %1293 = vmatprep.subr.mxu0 %v1127
        %1294 = vmatpush2.msra.mxu0 %v1126
        %1295 = vmatprep.subr.mxu0 %v1125
        %1296 = vmatpush2.msra.mxu0 %v1124
        %1297 = vmatprep.subr.mxu0 %v1123
        %1298 = vmatpush2.msra.mxu0 %v1122
        %1299 = vmatprep.mubr.f32.mxu0 %v1230
        %1300 = vmatmul.mubr.f32.gmra.mxu0 %v1225
        %v1301 = vpop.f32.mrf.mxu0
        %v1302 = vadd.f32 1e-06, %v1301
        %v1303 = vpop.f32.mrf.mxu0
        %v1304 = vadd.f32 1e-06, %v1303
        %1305 = vmatprep.mubr.f32.mxu0 %v1233
        %1306 = vmatmul.mubr.f32.gmra.mxu0 %v1227
        %v1307 = vpop.f32.mrf.mxu0
        %v1308 = vadd.f32 1e-06, %v1307
        %v1309 = vpop.f32.mrf.mxu0
        %v1310 = vadd.f32 1e-06, %v1309
        %1311 = vdwg.mxu0
        %v1312 = vrsqrt.pop %v1302
        %v1313 = vrsqrt.pop %v1304
        %v1314 = vrsqrt.pop %v1308
        %v1315 = vrsqrt.pop %v1310
        %v1316 = vmul.f32 %v1221, %v1312
        %v1317 = vmul.f32 %v1222, %v1313
        %v1318 = vmul.f32 %v1223, %v1314
        %v1319 = vmul.f32 %v1224, %v1315
        %1320 = vmatprep.subr.mxu0 0.0
        %1321 = vmatpush1.msra.mxu0 0.0
        %1322 = vmatprep.subr.mxu0 0.0
        %1323 = vmatpush1.msra.mxu0 0.0
        %1324 = vmatprep.subr.mxu0 0.0
        %1325 = vmatpush1.msra.mxu0 0.0
        %1326 = vmatprep.subr.mxu0 0.0
        %1327 = vmatpush1.msra.mxu0 0.0
        %1328 = vmatprep.subr.mxu0 0.0
        %1329 = vmatpush1.msra.mxu0 0.0
        %1330 = vmatprep.subr.mxu0 0.0
        %1331 = vmatpush1.msra.mxu0 0.0
        %1332 = vmatprep.subr.mxu0 0.0
        %1333 = vmatpush1.msra.mxu0 0.0
        %1334 = vmatprep.subr.mxu0 0.0
        %1335 = vmatpush1.msra.mxu0 0.0
        %1336 = vmatprep.subr.mxu0 0.0
        %1337 = vmatpush1.msra.mxu0 0.0
        %1338 = vmatprep.subr.mxu0 0.0
        %1339 = vmatpush1.msra.mxu0 0.0
        %1340 = vmatprep.subr.mxu0 0.0
        %1341 = vmatpush1.msra.mxu0 0.0
        %1342 = vmatprep.subr.mxu0 0.0
        %1343 = vmatpush1.msra.mxu0 0.0
        %1344 = vmatprep.subr.mxu0 0.0
        %1345 = vmatpush1.msra.mxu0 0.0
        %1346 = vmatprep.subr.mxu0 0.0
        %1347 = vmatpush1.msra.mxu0 0.0
        %1348 = vmatprep.subr.mxu0 %v1319
        %1349 = vmatpush1.msra.mxu0 %v1318
        %1350 = vmatprep.subr.mxu0 %v1317
        %1351 = vmatpush1.msra.mxu0 %v1316
        %1352 = vmatprep.subr.mxu0 0.0
        %1353 = vmatpush2.msra.mxu0 0.0
        %1354 = vmatprep.subr.mxu0 0.0
        %1355 = vmatpush2.msra.mxu0 0.0
        %1356 = vmatprep.subr.mxu0 0.0
        %1357 = vmatpush2.msra.mxu0 0.0
        %1358 = vmatprep.subr.mxu0 0.0
        %1359 = vmatpush2.msra.mxu0 0.0
        %1360 = vmatprep.subr.mxu0 0.0
        %1361 = vmatpush2.msra.mxu0 0.0
        %1362 = vmatprep.subr.mxu0 0.0
        %1363 = vmatpush2.msra.mxu0 0.0
        %1364 = vmatprep.subr.mxu0 0.0
        %1365 = vmatpush2.msra.mxu0 0.0
        %1366 = vmatprep.subr.mxu0 0.0
        %1367 = vmatpush2.msra.mxu0 0.0
        %1368 = vmatprep.subr.mxu0 0.0
        %1369 = vmatpush2.msra.mxu0 0.0
        %1370 = vmatprep.subr.mxu0 0.0
        %1371 = vmatpush2.msra.mxu0 0.0
        %1372 = vmatprep.subr.mxu0 0.0
        %1373 = vmatpush2.msra.mxu0 0.0
        %1374 = vmatprep.subr.mxu0 0.0
        %1375 = vmatpush2.msra.mxu0 0.0
        %1376 = vmatprep.subr.mxu0 0.0
        %1377 = vmatpush2.msra.mxu0 0.0
        %1378 = vmatprep.subr.mxu0 0.0
        %1379 = vmatpush2.msra.mxu0 0.0
        %1380 = vmatprep.subr.mxu0 0.0
        %1381 = vmatpush2.msra.mxu0 0.0
        %1382 = vmatprep.subr.mxu0 0.0
        %1383 = vmatpush2.msra.mxu0 0.0
        %1384 = vmatprep.mubr.f32.mxu0 0.0
        %1385 = vmatmul.mubr.f32.gmra.mxu0 %v614
        %v1386 = vpop.f32.mrf.mxu0
        %v1387 = vadd.f32 0.0, %v1386
        %v1388 = vpop.f32.mrf.mxu0
        %v1389 = vadd.f32 0.0, %v1388
        %1390 = vmatprep.mubr.f32.mxu0 0.0
        %1391 = vmatmul.mubr.f32.gmra.mxu0 %v617
        %v1392 = vpop.f32.mrf.mxu0
        %v1393 = vadd.f32 0.0, %v1392
        %v1394 = vpop.f32.mrf.mxu0
        %v1395 = vadd.f32 0.0, %v1394
        %1396 = vdwg.mxu0
        %1397 = vmatprep.subr.mxu0 0.0
        %1398 = vmatpush1.msra.mxu0 0.0
        %1399 = vmatprep.subr.mxu0 0.0
        %1400 = vmatpush1.msra.mxu0 0.0
        %1401 = vmatprep.subr.mxu0 0.0
        %1402 = vmatpush1.msra.mxu0 0.0
        %1403 = vmatprep.subr.mxu0 0.0
        %1404 = vmatpush1.msra.mxu0 0.0
        %1405 = vmatprep.subr.mxu0 0.0
        %1406 = vmatpush1.msra.mxu0 0.0
        %1407 = vmatprep.subr.mxu0 0.0
        %1408 = vmatpush1.msra.mxu0 0.0
        %1409 = vmatprep.subr.mxu0 0.0
        %1410 = vmatpush1.msra.mxu0 0.0
        %1411 = vmatprep.subr.mxu0 0.0
        %1412 = vmatpush1.msra.mxu0 0.0
        %1413 = vmatprep.subr.mxu0 0.0
        %1414 = vmatpush1.msra.mxu0 0.0
        %1415 = vmatprep.subr.mxu0 0.0
        %1416 = vmatpush1.msra.mxu0 0.0
        %1417 = vmatprep.subr.mxu0 0.0
        %1418 = vmatpush1.msra.mxu0 0.0
        %1419 = vmatprep.subr.mxu0 0.0
        %1420 = vmatpush1.msra.mxu0 0.0
        %1421 = vmatprep.subr.mxu0 0.0
        %1422 = vmatpush1.msra.mxu0 0.0
        %1423 = vmatprep.subr.mxu0 0.0
        %1424 = vmatpush1.msra.mxu0 0.0
        %1425 = vmatprep.subr.mxu0 %v1319
        %1426 = vmatpush1.msra.mxu0 %v1318
        %1427 = vmatprep.subr.mxu0 %v1317
        %1428 = vmatpush1.msra.mxu0 %v1316
        %1429 = vmatprep.subr.mxu0 0.0
        %1430 = vmatpush2.msra.mxu0 0.0
        %1431 = vmatprep.subr.mxu0 0.0
        %1432 = vmatpush2.msra.mxu0 0.0
        %1433 = vmatprep.subr.mxu0 0.0
        %1434 = vmatpush2.msra.mxu0 0.0
        %1435 = vmatprep.subr.mxu0 0.0
        %1436 = vmatpush2.msra.mxu0 0.0
        %1437 = vmatprep.subr.mxu0 0.0
        %1438 = vmatpush2.msra.mxu0 0.0
        %1439 = vmatprep.subr.mxu0 0.0
        %1440 = vmatpush2.msra.mxu0 0.0
        %1441 = vmatprep.subr.mxu0 0.0
        %1442 = vmatpush2.msra.mxu0 0.0
        %1443 = vmatprep.subr.mxu0 0.0
        %1444 = vmatpush2.msra.mxu0 0.0
        %1445 = vmatprep.subr.mxu0 0.0
        %1446 = vmatpush2.msra.mxu0 0.0
        %1447 = vmatprep.subr.mxu0 0.0
        %1448 = vmatpush2.msra.mxu0 0.0
        %1449 = vmatprep.subr.mxu0 0.0
        %1450 = vmatpush2.msra.mxu0 0.0
        %1451 = vmatprep.subr.mxu0 0.0
        %1452 = vmatpush2.msra.mxu0 0.0
        %1453 = vmatprep.subr.mxu0 0.0
        %1454 = vmatpush2.msra.mxu0 0.0
        %1455 = vmatprep.subr.mxu0 0.0
        %1456 = vmatpush2.msra.mxu0 0.0
        %1457 = vmatprep.subr.mxu0 0.0
        %1458 = vmatpush2.msra.mxu0 0.0
        %1459 = vmatprep.subr.mxu0 0.0
        %1460 = vmatpush2.msra.mxu0 0.0
        %1461 = vmatprep.mubr.f32.mxu0 0.0
        %1462 = vmatmul.mubr.f32.gmra.mxu0 %v695
        %v1463 = vpop.f32.mrf.mxu0
        %v1464 = vadd.f32 0.0, %v1463
        %v1465 = vpop.f32.mrf.mxu0
        %v1466 = vadd.f32 0.0, %v1465
        %1467 = vmatprep.mubr.f32.mxu0 0.0
        %1468 = vmatmul.mubr.f32.gmra.mxu0 %v698
        %v1469 = vpop.f32.mrf.mxu0
        %v1470 = vadd.f32 0.0, %v1469
        %v1471 = vpop.f32.mrf.mxu0
        %v1472 = vadd.f32 0.0, %v1471
        %1473 = vdwg.mxu0
        %v1474 = vld [vmem:[#allocation14] sm:$0xff]
        %v1475 = vld [vmem:[#allocation14 + $0x8] sm:$0xff]
        %v1476 = vld [vmem:[#allocation13] sm:$0xff]
        %v1477 = vld [vmem:[#allocation13 + $0x8] sm:$0xff]
        %v1478 = vld [vmem:[#allocation13 + $0x10] sm:$0xff]
        %v1479 = vld [vmem:[#allocation13 + $0x18] sm:$0xff]
        %v1480 = vld [vmem:[#allocation13 + $0x20] sm:$0xff]
        %v1481 = vld [vmem:[#allocation13 + $0x28] sm:$0xff]
        %v1482 = vld [vmem:[#allocation13 + $0x30] sm:$0xff]
        %v1483 = vld [vmem:[#allocation13 + $0x38] sm:$0xff]
        %v1484 = vld [vmem:[#allocation13 + $0x40] sm:$0xff]
        %v1485 = vld [vmem:[#allocation13 + $0x48] sm:$0xff]
        %v1486 = vld [vmem:[#allocation13 + $0x50] sm:$0xff]
        %v1487 = vld [vmem:[#allocation13 + $0x58] sm:$0xff]
        %v1488 = vld [vmem:[#allocation13 + $0x60] sm:$0xff]
        %v1489 = vld [vmem:[#allocation13 + $0x68] sm:$0xff]
        %v1490 = vld [vmem:[#allocation13 + $0x70] sm:$0xff]
        %v1491 = vld [vmem:[#allocation13 + $0x78] sm:$0xff]
        %v1492 = vld [vmem:[#allocation13 + $0x80] sm:$0xff]
        %v1493 = vld [vmem:[#allocation13 + $0x88] sm:$0xff]
        %v1494 = vld [vmem:[#allocation13 + $0x90] sm:$0xff]
        %v1495 = vld [vmem:[#allocation13 + $0x98] sm:$0xff]
        %v1496 = vld [vmem:[#allocation13 + $0xa0] sm:$0xff]
        %v1497 = vld [vmem:[#allocation13 + $0xa8] sm:$0xff]
        %v1498 = vld [vmem:[#allocation13 + $0xb0] sm:$0xff]
        %v1499 = vld [vmem:[#allocation13 + $0xb8] sm:$0xff]
        %v1501 = vsel %vm441, %v1389, 0
        %v1504 = vsel %vm441, %v1395, 0
        %1506 = vmatprep.subr.mxu0 0.0
        %1507 = vmatpush1.msra.mxu0 %v1491
        %1508 = vmatprep.subr.mxu0 0.0
        %1509 = vmatpush1.msra.mxu0 %v1490
        %1510 = vmatprep.subr.mxu0 0.0
        %1511 = vmatpush1.msra.mxu0 %v1489
        %1512 = vmatprep.subr.mxu0 0.0
        %1513 = vmatpush1.msra.mxu0 %v1488
        %1514 = vmatprep.subr.mxu0 0.0
        %1515 = vmatpush1.msra.mxu0 %v1487
        %1516 = vmatprep.subr.mxu0 0.0
        %1517 = vmatpush1.msra.mxu0 %v1486
        %1518 = vmatprep.subr.mxu0 0.0
        %1519 = vmatpush1.msra.mxu0 %v1485
        %1520 = vmatprep.subr.mxu0 0.0
        %1521 = vmatpush1.msra.mxu0 %v1484
        %1522 = vmatprep.subr.mxu0 0.0
        %1523 = vmatpush1.msra.mxu0 %v1483
        %1524 = vmatprep.subr.mxu0 0.0
        %1525 = vmatpush1.msra.mxu0 %v1482
        %1526 = vmatprep.subr.mxu0 0.0
        %1527 = vmatpush1.msra.mxu0 %v1481
        %1528 = vmatprep.subr.mxu0 0.0
        %1529 = vmatpush1.msra.mxu0 %v1480
        %1530 = vmatprep.subr.mxu0 0.0
        %1531 = vmatpush1.msra.mxu0 %v1479
        %1532 = vmatprep.subr.mxu0 0.0
        %1533 = vmatpush1.msra.mxu0 %v1478
        %1534 = vmatprep.subr.mxu0 0.0
        %1535 = vmatpush1.msra.mxu0 %v1477
        %1536 = vmatprep.subr.mxu0 0.0
        %1537 = vmatpush1.msra.mxu0 %v1476
        %1538 = vmatprep.subr.mxu0 0.0
        %1539 = vmatpush2.msra.mxu0 0.0
        %1540 = vmatprep.subr.mxu0 0.0
        %1541 = vmatpush2.msra.mxu0 0.0
        %1542 = vmatprep.subr.mxu0 0.0
        %1543 = vmatpush2.msra.mxu0 0.0
        %1544 = vmatprep.subr.mxu0 0.0
        %1545 = vmatpush2.msra.mxu0 0.0
        %1546 = vmatprep.subr.mxu0 0.0
        %1547 = vmatpush2.msra.mxu0 0.0
        %1548 = vmatprep.subr.mxu0 0.0
        %1549 = vmatpush2.msra.mxu0 0.0
        %1550 = vmatprep.subr.mxu0 0.0
        %1551 = vmatpush2.msra.mxu0 0.0
        %1552 = vmatprep.subr.mxu0 0.0
        %1553 = vmatpush2.msra.mxu0 0.0
        %1554 = vmatprep.subr.mxu0 0.0
        %1555 = vmatpush2.msra.mxu0 %v1499
        %1556 = vmatprep.subr.mxu0 0.0
        %1557 = vmatpush2.msra.mxu0 %v1498
        %1558 = vmatprep.subr.mxu0 0.0
        %1559 = vmatpush2.msra.mxu0 %v1497
        %1560 = vmatprep.subr.mxu0 0.0
        %1561 = vmatpush2.msra.mxu0 %v1496
        %1562 = vmatprep.subr.mxu0 0.0
        %1563 = vmatpush2.msra.mxu0 %v1495
        %1564 = vmatprep.subr.mxu0 0.0
        %1565 = vmatpush2.msra.mxu0 %v1494
        %1566 = vmatprep.subr.mxu0 0.0
        %1567 = vmatpush2.msra.mxu0 %v1493
        %1568 = vmatprep.subr.mxu0 0.0
        %1569 = vmatpush2.msra.mxu0 %v1492
        %1570 = vmatprep.mubr.f32.mxu0 %v1501
        %1571 = vmatmul.mubr.f32.gmra.mxu0 %v1387
        %v1572 = vpop.f32.mrf.mxu0
        %v1573 = vadd.f32 0.0, %v1572
        %v1574 = vpop.f32.mrf.mxu0
        %1575 = vmatprep.mubr.f32.mxu0 %v1504
        %1576 = vmatmul.mubr.f32.gmra.mxu0 %v1393
        %v1577 = vpop.f32.mrf.mxu0
        %v1578 = vadd.f32 0.0, %v1577
        %v1579 = vpop.f32.mrf.mxu0
        %1580 = vdwg.mxu0
        %v1581 = vadd.f32 %v1474, %v1573
        %v1582 = vadd.f32 %v1475, %v1578
        %s1583 = scalar_lea.vmem [#allocation13], 192
        %v1584 = vld [vmem:[%s1583] sm:$0xff]
        %v1585 = vld [vmem:[%s1583 + $0x8] sm:$0xff]
        %v1586 = vld [vmem:[%s1583 + $0x10] sm:$0xff]
        %v1587 = vld [vmem:[%s1583 + $0x18] sm:$0xff]
        %v1588 = vld [vmem:[%s1583 + $0x20] sm:$0xff]
        %v1589 = vld [vmem:[%s1583 + $0x28] sm:$0xff]
        %v1590 = vld [vmem:[%s1583 + $0x30] sm:$0xff]
        %v1591 = vld [vmem:[%s1583 + $0x38] sm:$0xff]
        %v1592 = vld [vmem:[%s1583 + $0x40] sm:$0xff]
        %v1593 = vld [vmem:[%s1583 + $0x48] sm:$0xff]
        %v1594 = vld [vmem:[%s1583 + $0x50] sm:$0xff]
        %v1595 = vld [vmem:[%s1583 + $0x58] sm:$0xff]
        %v1596 = vld [vmem:[%s1583 + $0x60] sm:$0xff]
        %v1597 = vld [vmem:[%s1583 + $0x68] sm:$0xff]
        %v1598 = vld [vmem:[%s1583 + $0x70] sm:$0xff]
        %v1599 = vld [vmem:[%s1583 + $0x78] sm:$0xff]
        %v1600 = vld [vmem:[%s1583 + $0x80] sm:$0xff]
        %v1601 = vld [vmem:[%s1583 + $0x88] sm:$0xff]
        %v1602 = vld [vmem:[%s1583 + $0x90] sm:$0xff]
        %v1603 = vld [vmem:[%s1583 + $0x98] sm:$0xff]
        %v1604 = vld [vmem:[%s1583 + $0xa0] sm:$0xff]
        %v1605 = vld [vmem:[%s1583 + $0xa8] sm:$0xff]
        %v1606 = vld [vmem:[%s1583 + $0xb0] sm:$0xff]
        %v1607 = vld [vmem:[%s1583 + $0xb8] sm:$0xff]
        %v1609 = vsel %vm441, %v1317, 0
        %v1612 = vsel %vm441, %v1319, 0
        %1614 = vmatprep.subr.mxu0 0.0
        %1615 = vmatpush1.msra.mxu0 %v1599
        %1616 = vmatprep.subr.mxu0 0.0
        %1617 = vmatpush1.msra.mxu0 %v1598
        %1618 = vmatprep.subr.mxu0 0.0
        %1619 = vmatpush1.msra.mxu0 %v1597
        %1620 = vmatprep.subr.mxu0 0.0
        %1621 = vmatpush1.msra.mxu0 %v1596
        %1622 = vmatprep.subr.mxu0 0.0
        %1623 = vmatpush1.msra.mxu0 %v1595
        %1624 = vmatprep.subr.mxu0 0.0
        %1625 = vmatpush1.msra.mxu0 %v1594
        %1626 = vmatprep.subr.mxu0 0.0
        %1627 = vmatpush1.msra.mxu0 %v1593
        %1628 = vmatprep.subr.mxu0 0.0
        %1629 = vmatpush1.msra.mxu0 %v1592
        %1630 = vmatprep.subr.mxu0 0.0
        %1631 = vmatpush1.msra.mxu0 %v1591
        %1632 = vmatprep.subr.mxu0 0.0
        %1633 = vmatpush1.msra.mxu0 %v1590
        %1634 = vmatprep.subr.mxu0 0.0
        %1635 = vmatpush1.msra.mxu0 %v1589
        %1636 = vmatprep.subr.mxu0 0.0
        %1637 = vmatpush1.msra.mxu0 %v1588
        %1638 = vmatprep.subr.mxu0 0.0
        %1639 = vmatpush1.msra.mxu0 %v1587
        %1640 = vmatprep.subr.mxu0 0.0
        %1641 = vmatpush1.msra.mxu0 %v1586
        %1642 = vmatprep.subr.mxu0 0.0
        %1643 = vmatpush1.msra.mxu0 %v1585
        %1644 = vmatprep.subr.mxu0 0.0
        %1645 = vmatpush1.msra.mxu0 %v1584
        %1646 = vmatprep.subr.mxu0 0.0
        %1647 = vmatpush2.msra.mxu0 0.0
        %1648 = vmatprep.subr.mxu0 0.0
        %1649 = vmatpush2.msra.mxu0 0.0
        %1650 = vmatprep.subr.mxu0 0.0
        %1651 = vmatpush2.msra.mxu0 0.0
        %1652 = vmatprep.subr.mxu0 0.0
        %1653 = vmatpush2.msra.mxu0 0.0
        %1654 = vmatprep.subr.mxu0 0.0
        %1655 = vmatpush2.msra.mxu0 0.0
        %1656 = vmatprep.subr.mxu0 0.0
        %1657 = vmatpush2.msra.mxu0 0.0
        %1658 = vmatprep.subr.mxu0 0.0
        %1659 = vmatpush2.msra.mxu0 0.0
        %1660 = vmatprep.subr.mxu0 0.0
        %1661 = vmatpush2.msra.mxu0 0.0
        %1662 = vmatprep.subr.mxu0 0.0
        %1663 = vmatpush2.msra.mxu0 %v1607
        %1664 = vmatprep.subr.mxu0 0.0
        %1665 = vmatpush2.msra.mxu0 %v1606
        %1666 = vmatprep.subr.mxu0 0.0
        %1667 = vmatpush2.msra.mxu0 %v1605
        %1668 = vmatprep.subr.mxu0 0.0
        %1669 = vmatpush2.msra.mxu0 %v1604
        %1670 = vmatprep.subr.mxu0 0.0
        %1671 = vmatpush2.msra.mxu0 %v1603
        %1672 = vmatprep.subr.mxu0 0.0
        %1673 = vmatpush2.msra.mxu0 %v1602
        %1674 = vmatprep.subr.mxu0 0.0
        %1675 = vmatpush2.msra.mxu0 %v1601
        %1676 = vmatprep.subr.mxu0 0.0
        %1677 = vmatpush2.msra.mxu0 %v1600
        %1678 = vmatprep.mubr.f32.mxu0 %v1609
        %1679 = vmatmul.mubr.f32.gmra.mxu0 %v1316
        %v1680 = vpop.f32.mrf.mxu0
        %v1681 = vadd.f32 0.0, %v1680
        %v1682 = vpop.f32.mrf.mxu0
        %1683 = vmatprep.mubr.f32.mxu0 %v1612
        %1684 = vmatmul.mubr.f32.gmra.mxu0 %v1318
        %v1685 = vpop.f32.mrf.mxu0
        %v1686 = vadd.f32 0.0, %v1685
        %v1687 = vpop.f32.mrf.mxu0
        %1688 = vdwg.mxu0
        %v1689 = vadd.f32 %v1581, %v1681
        %v1690 = vadd.f32 %v1582, %v1686
        %s1691 = scalar_lea.vmem [#allocation13], 384
        %v1692 = vld [vmem:[%s1691] sm:$0xff]
        %v1693 = vld [vmem:[%s1691 + $0x8] sm:$0xff]
        %v1694 = vld [vmem:[%s1691 + $0x10] sm:$0xff]
        %v1695 = vld [vmem:[%s1691 + $0x18] sm:$0xff]
        %v1696 = vld [vmem:[%s1691 + $0x20] sm:$0xff]
        %v1697 = vld [vmem:[%s1691 + $0x28] sm:$0xff]
        %v1698 = vld [vmem:[%s1691 + $0x30] sm:$0xff]
        %v1699 = vld [vmem:[%s1691 + $0x38] sm:$0xff]
        %v1700 = vld [vmem:[%s1691 + $0x40] sm:$0xff]
        %v1701 = vld [vmem:[%s1691 + $0x48] sm:$0xff]
        %v1702 = vld [vmem:[%s1691 + $0x50] sm:$0xff]
        %v1703 = vld [vmem:[%s1691 + $0x58] sm:$0xff]
        %v1704 = vld [vmem:[%s1691 + $0x60] sm:$0xff]
        %v1705 = vld [vmem:[%s1691 + $0x68] sm:$0xff]
        %v1706 = vld [vmem:[%s1691 + $0x70] sm:$0xff]
        %v1707 = vld [vmem:[%s1691 + $0x78] sm:$0xff]
        %v1708 = vld [vmem:[%s1691 + $0x80] sm:$0xff]
        %v1709 = vld [vmem:[%s1691 + $0x88] sm:$0xff]
        %v1710 = vld [vmem:[%s1691 + $0x90] sm:$0xff]
        %v1711 = vld [vmem:[%s1691 + $0x98] sm:$0xff]
        %v1712 = vld [vmem:[%s1691 + $0xa0] sm:$0xff]
        %v1713 = vld [vmem:[%s1691 + $0xa8] sm:$0xff]
        %v1714 = vld [vmem:[%s1691 + $0xb0] sm:$0xff]
        %v1715 = vld [vmem:[%s1691 + $0xb8] sm:$0xff]
        %v1717 = vsel %vm441, %v1466, 0
        %v1720 = vsel %vm441, %v1472, 0
        %1722 = vmatprep.subr.mxu0 0.0
        %1723 = vmatpush1.msra.mxu0 %v1707
        %1724 = vmatprep.subr.mxu0 0.0
        %1725 = vmatpush1.msra.mxu0 %v1706
        %1726 = vmatprep.subr.mxu0 0.0
        %1727 = vmatpush1.msra.mxu0 %v1705
        %1728 = vmatprep.subr.mxu0 0.0
        %1729 = vmatpush1.msra.mxu0 %v1704
        %1730 = vmatprep.subr.mxu0 0.0
        %1731 = vmatpush1.msra.mxu0 %v1703
        %1732 = vmatprep.subr.mxu0 0.0
        %1733 = vmatpush1.msra.mxu0 %v1702
        %1734 = vmatprep.subr.mxu0 0.0
        %1735 = vmatpush1.msra.mxu0 %v1701
        %1736 = vmatprep.subr.mxu0 0.0
        %1737 = vmatpush1.msra.mxu0 %v1700
        %1738 = vmatprep.subr.mxu0 0.0
        %1739 = vmatpush1.msra.mxu0 %v1699
        %1740 = vmatprep.subr.mxu0 0.0
        %1741 = vmatpush1.msra.mxu0 %v1698
        %1742 = vmatprep.subr.mxu0 0.0
        %1743 = vmatpush1.msra.mxu0 %v1697
        %1744 = vmatprep.subr.mxu0 0.0
        %1745 = vmatpush1.msra.mxu0 %v1696
        %1746 = vmatprep.subr.mxu0 0.0
        %1747 = vmatpush1.msra.mxu0 %v1695
        %1748 = vmatprep.subr.mxu0 0.0
        %1749 = vmatpush1.msra.mxu0 %v1694
        %1750 = vmatprep.subr.mxu0 0.0
        %1751 = vmatpush1.msra.mxu0 %v1693
        %1752 = vmatprep.subr.mxu0 0.0
        %1753 = vmatpush1.msra.mxu0 %v1692
        %1754 = vmatprep.subr.mxu0 0.0
        %1755 = vmatpush2.msra.mxu0 0.0
        %1756 = vmatprep.subr.mxu0 0.0
        %1757 = vmatpush2.msra.mxu0 0.0
        %1758 = vmatprep.subr.mxu0 0.0
        %1759 = vmatpush2.msra.mxu0 0.0
        %1760 = vmatprep.subr.mxu0 0.0
        %1761 = vmatpush2.msra.mxu0 0.0
        %1762 = vmatprep.subr.mxu0 0.0
        %1763 = vmatpush2.msra.mxu0 0.0
        %1764 = vmatprep.subr.mxu0 0.0
        %1765 = vmatpush2.msra.mxu0 0.0
        %1766 = vmatprep.subr.mxu0 0.0
        %1767 = vmatpush2.msra.mxu0 0.0
        %1768 = vmatprep.subr.mxu0 0.0
        %1769 = vmatpush2.msra.mxu0 0.0
        %1770 = vmatprep.subr.mxu0 0.0
        %1771 = vmatpush2.msra.mxu0 %v1715
        %1772 = vmatprep.subr.mxu0 0.0
        %1773 = vmatpush2.msra.mxu0 %v1714
        %1774 = vmatprep.subr.mxu0 0.0
        %1775 = vmatpush2.msra.mxu0 %v1713
        %1776 = vmatprep.subr.mxu0 0.0
        %1777 = vmatpush2.msra.mxu0 %v1712
        %1778 = vmatprep.subr.mxu0 0.0
        %1779 = vmatpush2.msra.mxu0 %v1711
        %1780 = vmatprep.subr.mxu0 0.0
        %1781 = vmatpush2.msra.mxu0 %v1710
        %1782 = vmatprep.subr.mxu0 0.0
        %1783 = vmatpush2.msra.mxu0 %v1709
        %1784 = vmatprep.subr.mxu0 0.0
        %1785 = vmatpush2.msra.mxu0 %v1708
        %1786 = vmatprep.mubr.f32.mxu0 %v1717
        %1787 = vmatmul.mubr.f32.gmra.mxu0 %v1464
        %v1788 = vpop.f32.mrf.mxu0
        %v1789 = vadd.f32 0.0, %v1788
        %v1790 = vpop.f32.mrf.mxu0
        %1791 = vmatprep.mubr.f32.mxu0 %v1720
        %1792 = vmatmul.mubr.f32.gmra.mxu0 %v1470
        %v1793 = vpop.f32.mrf.mxu0
        %v1794 = vadd.f32 0.0, %v1793
        %v1795 = vpop.f32.mrf.mxu0
        %1796 = vdwg.mxu0
        %v1797 = vadd.f32 %v1689, %v1789
        %v1798 = vadd.f32 %v1690, %v1794
        %1799 = vst [vmem:[%s425] sm:$0xff] %v1797
        %1800 = vst [vmem:[%s425 + $0x8] sm:$0xff] %v1798
        %s1801 = sand.u32 %s210, 1
        %s1802 = scalar_lea.sflag [#allocation4], %s1801
        %s1803 = sand.u32 %s210, 1
        %s1804 = smul.addr %s1803, 16
        %s1805 = scalar_lea.vmem [#allocation16], %s1804
        // Predicated region
        $region85: #{tpu_custom_call.1} parent=51 // pred_check
          %p1806 = pneg %p220
        $region86: #{tpu_custom_call.1} parent=51 // pred_check_branch
          %1808 = sbr.rel (%p1806) target = $region88
        $region87: #{tpu_custom_call.1} parent=51 // pred_region
          %s1810 = ssub.s32 256, 256
          %1811 = vsyncadd %s1802, %s1810
          %s1812 = smul.addr %s29, 2
          %s1813 = smul.addr %s1812, 128
          %s1814 = scalar_lea.hbm %s8, %s1813
          %s1815 = sshll.u32 %s1805, 4
          %s1816 = int_to_ptr.vmem [resolvable:$true] %s1815
          %1821 = dma.vmem_to_hbm [thread:$0]  %s1816, 256, %s1814, %s1802, 128, 128, 8
        $region88: #{tpu_custom_call.1} parent=51 // pred_fallthru
          _
      $region52: #{tpu_custom_call.1} parent=5 // pred_fallthru
        _
      %p1822 = scmp.le.s32.totalorder 2, %s24
      // Predicated region
      $region89: #{tpu_custom_call.1} parent=5 // pred_check
        %p1823 = pneg %p1822
      $region90: #{tpu_custom_call.1} parent=5 // pred_check_branch
        %1825 = sbr.rel (%p1823) target = $region92
      $region91: #{tpu_custom_call.1} parent=5 // pred_region
        %s1826 = ssub.s32 %s24, 2
        // Predicated region
        $region93: #{tpu_custom_call.1} parent=91 // pred_check
          %p1827 = pneg %p226
        $region94: #{tpu_custom_call.1} parent=91 // pred_check_branch
          %1829 = sbr.rel (%p1827) target = $region96
        $region95: #{tpu_custom_call.1} parent=91 // pred_region
          %s1830 = sand.u32 %s211, 1
          %s1831 = scalar_lea.sflag [#allocation4], %s1830
          %s1832 = sand.u32 %s211, 1
          %s1833 = smul.addr %s1832, 16
          %s1834 = scalar_lea.vmem [#allocation16], %s1833
          %1835 = dma.done %s1831, 256
        $region96: #{tpu_custom_call.1} parent=91 // pred_fallthru
          _
      $region92: #{tpu_custom_call.1} parent=5 // pred_fallthru
        _
    $region6: #{tpu_custom_call.1} parent=1 // loop_footer
      %s28 = sadd.s32 1, %s24
    $region7: #{tpu_custom_call.1} parent=1 // loop_footer_branch
      %23 = sbr.rel target = $region3
    $region8: #{tpu_custom_call.1} parent=1 // loop_exit
      _
    %1836 = vsyncpa [#allocation3], 1
    %s1837 = scalar_lea.sflag [#allocation3], 1
    %1838 = vsyncpa %s1837, 1
    %1839 = vsyncpa [#allocation6], 1
    %1840 = vsyncpa [#allocation9], 1
    %1841 = vsyncpa [#allocation12], 1
    %1842 = vsyncpa [#allocation15], 1
    %1843 = vsyncpa [#allocation4], 1
    %s1844 = scalar_lea.sflag [#allocation4], 1
    %1845 = vsyncpa %s1844, 1

</llo_original>
